<compile_context>
chip_gen: v5e
topology: v5e:2x2
jax: 0.10.0
libtpu: 0.0.40
codegen_flags: <defaults>
</compile_context>

<pallas_src>
import jax
import jax.numpy as jnp
from jax import lax
from jax.experimental import pallas as pl
from jax.experimental.pallas import tpu as pltpu


def _relu6(v):
    return jnp.clip(v, 0.0, 6.0)


# ----------------------------------------------------------------------------
# Fused ASFF (level=2) kernel factory.  All spatial sizes are static (closure).
# ----------------------------------------------------------------------------
def _make_asff_kernel(H, W):
    S = H * W

    def kernel(x0_ref, x1_ref, x2_ref, u0_ref, u1_ref, m_ref,
               wc0_ref, bc0_ref, wc1_ref, bc1_ref,
               wqb_ref, bqb_ref, wl_ref, bl_ref,
               we_ref, be_ref, o_ref):
        f32p = dict(preferred_element_type=jnp.float32)

        # ---- compress_level_0 (1x1 conv + folded BN + ReLU6), nearest x4 upsample
        #      (upsample = matmul with precomputed 0/1 replication table, exact)
        c0 = _relu6(jnp.dot(wc0_ref[...], x0_ref[0], **f32p) + bc0_ref[...])  # (ci, h0*w0)
        l0 = jnp.dot(c0, u0_ref[...], **f32p)                                 # (ci, S)

        # ---- compress_level_1 (1x1 conv + folded BN + ReLU6), nearest x2 upsample
        c1 = _relu6(jnp.dot(wc1_ref[...], x1_ref[0], **f32p) + bc1_ref[...])  # (ci, h1*w1)
        l1 = jnp.dot(c1, u1_ref[...], **f32p)                                 # (ci, S)

        l2 = x2_ref[0]                                                        # (ci, S)

        # ---- weight_level_{0,1,2} fused as ONE block-diagonal 1x1 conv,
        #      then weight_levels (one matmul) and a 3-way softmax.
        lstack = jnp.concatenate([l0, l1, l2], axis=0)                        # (3ci, S)
        cat = _relu6(jnp.dot(wqb_ref[...], lstack, **f32p) + bqb_ref[...])    # (3cc, S)
        logits = jnp.dot(wl_ref[...], cat, **f32p) + bl_ref[...]              # (8, S) rows>=3 zero
        g0, g1, g2 = logits[0:1, :], logits[1:2, :], logits[2:3, :]
        m = jnp.maximum(jnp.maximum(g0, g1), g2)
        e0, e1, e2 = jnp.exp(g0 - m), jnp.exp(g1 - m), jnp.exp(g2 - m)
        inv = 1.0 / (e0 + e1 + e2)
        fused = l0 * (e0 * inv) + l1 * (e1 * inv) + l2 * (e2 * inv)           # (ci, S)

        # ---- expand: 3x3 SAME conv + folded BN + ReLU6
        # 8 lane-rolled copies of `fused`, multiplied by precomputed edge masks,
        # concatenated into one (9*ci, S) im2col slab -> single MXU matmul.
        masks = m_ref[...]                                                    # (8, S)
        taps = []
        t = 0
        for dy in (-1, 0, 1):
            for dx in (-1, 0, 1):
                if dy == 0 and dx == 0:
                    taps.append(fused)
                    continue
                off = dy * W + dx
                sh = pltpu.roll(fused, shift=(-off) % S, axis=1)
                taps.append(sh * masks[t:t + 1, :])
                t += 1
        col = jnp.concatenate(taps, axis=0)                                   # (9*ci, S)
        out = jnp.dot(we_ref[...], col, **f32p) + be_ref[...]                 # (co, S)
        o_ref[0] = _relu6(out)

    return kernel


# ----------------------------------------------------------------------------
# Host wrapper: fold BN, build static tables, flatten spatial, launch one kernel.
# Inputs are NCHW (PyTorch layout); output is NCHW.
# ----------------------------------------------------------------------------
@jax.jit
def asff_level2_forward(x0, x1, x2, p):
    N, c0_in, h0, w0 = x0.shape
    _, c1_in, h1, w1 = x1.shape
    _, c2, H, W = x2.shape
    S = H * W
    ci = p["wc0"].shape[0]
    cc = p["wq"].shape[1]
    c_out = p["we"].shape[0]
    f0, f1 = W // w0, W // w1
    assert H % h0 == 0 and W % w0 == 0 and H // h0 == W // w0
    assert H % h1 == 0 and W % w1 == 0 and H // h1 == W // w1

    # ---- fold eval-mode BN (scale, shift) into weights/biases (exact)
    wc0 = p["wc0"] * p["sc0"][:, None]
    bc0 = p["sh0"][:, None]
    wc1 = p["wc1"] * p["sc1"][:, None]
    bc1 = p["sh1"][:, None]
    # three weight_level convs -> one block-diagonal weight (48, 24)
    wq_f = p["wq"] * p["sq"][:, :, None]                       # (3, cc, ci)
    wq_blk = jnp.zeros((3 * cc, 3 * ci), jnp.float32)
    for lvl in range(3):
        wq_blk = wq_blk.at[lvl * cc:(lvl + 1) * cc,
                           lvl * ci:(lvl + 1) * ci].set(wq_f[lvl])
    bq_blk = p["bq"].reshape(3 * cc, 1)
    # weight_levels: pad out-rows 3->8 so the matmul M-dim is sublane-aligned
    wl = jnp.zeros((8, 3 * cc), jnp.float32).at[:3, :].set(p["wl"])
    bl = jnp.zeros((8, 1), jnp.float32).at[:3, 0].set(p["bl"])
    we = (p["we"] * p["se"][:, None, None, None]).reshape(c_out, 9 * ci)
    be = p["she"][:, None]

    # ---- static lookup tables (built once on host, constant-folded under jit)
    def upsample_matrix(hc, wc, f):
        # (hc*wc, S) with U[s, j] = 1 iff coarse(j) == s  ->  coarse @ U = nearest upsample
        j = jnp.arange(S)
        coarse = (j // W // f) * wc + (j % W) // f
        return (coarse[None, :] == jnp.arange(hc * wc)[:, None]).astype(jnp.float32)

    u0 = upsample_matrix(h0, w0, f0)                            # (h0*w0, S)
    u1 = upsample_matrix(h1, w1, f1)                            # (h1*w1, S)

    xi = jnp.arange(S) % W
    yi = jnp.arange(S) // W
    rows = []
    for dy in (-1, 0, 1):
        for dx in (-1, 0, 1):
            if dy == 0 and dx == 0:
                continue
            valid = jnp.ones((S,), bool)
            if dx == -1:
                valid = valid & (xi >= 1)
            if dx == 1:
                valid = valid & (xi <= W - 2)
            if dy == -1:
                valid = valid & (yi >= 1)
            if dy == 1:
                valid = valid & (yi <= H - 2)
            rows.append(valid)
    edge_mask = jnp.stack(rows).astype(jnp.float32)             # (8, S)

    # ---- flatten spatial onto the lane axis (free reshapes, NCHW is contiguous)
    x0f = x0.reshape(N, c0_in, h0 * w0)
    x1f = x1.reshape(N, c1_in, h1 * w1)
    x2f = x2.reshape(N, c2, S)

    kernel = _make_asff_kernel(H, W)

    def full(a):
        return pl.BlockSpec(a.shape, lambda b, _nd=a.ndim: (0,) * _nd)

    out = pl.pallas_call(
        kernel,
        out_shape=jax.ShapeDtypeStruct((N, c_out, S), jnp.float32),
        grid_spec=pltpu.PrefetchScalarGridSpec(
            num_scalar_prefetch=0,
            grid=(N,),
            in_specs=[
                pl.BlockSpec((1, c0_in, h0 * w0), lambda b: (b, 0, 0)),
                pl.BlockSpec((1, c1_in, h1 * w1), lambda b: (b, 0, 0)),
                pl.BlockSpec((1, c2, S), lambda b: (b, 0, 0)),
                full(u0), full(u1), full(edge_mask),
                full(wc0), full(bc0), full(wc1), full(bc1),
                full(wq_blk), full(bq_blk), full(wl), full(bl),
                full(we), full(be),
            ],
            out_specs=pl.BlockSpec((1, c_out, S), lambda b: (b, 0, 0)),
        ),
        compiler_params=pltpu.CompilerParams(
            dimension_semantics=("parallel",)),   # v7x: shard batches over 2 TCs
    )(x0f, x1f, x2f, u0, u1, edge_mask,
      wc0, bc0, wc1, bc1, wq_blk, bq_blk, wl, bl, we, be)
    return out.reshape(N, c_out, H, W)


# ----------------------------------------------------------------------------
# Pure-JAX reference (same math, NCHW) for validation
# ----------------------------------------------------------------------------
def ref_forward(x0, x1, x2, p):
    def pw(x, w, scale, shift):
        y = jnp.einsum("oi,nihw->nohw", w, x)
        y = y * scale[None, :, None, None] + shift[None, :, None, None]
        return jnp.clip(y, 0.0, 6.0)

    def up(x, s):
        n, c, h, w = x.shape
        x = jnp.broadcast_to(x[:, :, :, None, :, None], (n, c, h, s, w, s))
        return x.reshape(n, c, h * s, w * s)

    l0 = up(pw(x0, p["wc0"], p["sc0"], p["sh0"]), 4)
    l1 = up(pw(x1, p["wc1"], p["sc1"], p["sh1"]), 2)
    l2 = x2
    v0 = pw(l0, p["wq"][0], p["sq"][0], p["bq"][0])
    v1 = pw(l1, p["wq"][1], p["sq"][1], p["bq"][1])
    v2 = pw(l2, p["wq"][2], p["sq"][2], p["bq"][2])
    cat = jnp.concatenate([v0, v1, v2], axis=1)
    logits = jnp.einsum("oi,nihw->nohw", p["wl"], cat) + p["bl"][None, :, None, None]
    wgt = jax.nn.softmax(logits, axis=1)
    fused = l0 * wgt[:, 0:1] + l1 * wgt[:, 1:2] + l2 * wgt[:, 2:3]
    y = lax.conv_general_dilated(fused, p["we"].transpose(0, 3, 1, 2), (1, 1), "SAME",
                                 dimension_numbers=("NCHW", "OIHW", "NCHW"))
    y = y * p["se"][None, :, None, None] + p["she"][None, :, None, None]
    return jnp.clip(y, 0.0, 6.0)


# ----------------------------------------------------------------------------
# Deterministic parameter construction (level == 2, inter_dim = dim[2])
# ----------------------------------------------------------------------------
def make_params(key, dim, compress_c=16):
    dim0, dim1, dim2 = dim
    inter = dim2
    ks = iter(jax.random.split(key, 40))
    nrm = lambda shape, s=0.1: jax.random.normal(next(ks), shape, jnp.float32) * s
    uni = lambda shape: jax.random.uniform(next(ks), shape, jnp.float32, 0.5, 1.5)

    def bn(cout):  # folded eval-mode BatchNorm -> (scale, shift)
        gamma, beta = uni((cout,)), nrm((cout,))
        mean, var = nrm((cout,)), uni((cout,))
        scale = gamma / jnp.sqrt(var + 1e-5)
        return scale, beta - mean * scale

    p = {}
    p["wc0"] = nrm((inter, dim0)); p["sc0"], p["sh0"] = bn(inter)
    p["wc1"] = nrm((inter, dim1)); p["sc1"], p["sh1"] = bn(inter)
    p["wq"] = nrm((3, compress_c, inter))
    sq, bq = [], []
    for _ in range(3):
        s, b = bn(compress_c)
        sq.append(s); bq.append(b)
    p["sq"] = jnp.stack(sq); p["bq"] = jnp.stack(bq)
    p["wl"] = nrm((3, 3 * compress_c))            # weight_levels (has bias)
    p["bl"] = nrm((3,))
    p["we"] = nrm((dim1, 3, 3, inter), 0.05)      # expand conv, (O, KH, KW, I)
    p["se"], p["she"] = bn(dim1)
    return p


if __name__ == "__main__":
    N = 2
    dim = [16, 8, 8]          # level == 2  -> inter_dim = dim[2] = 8
    H = W = 16                # spatial of x_level_2
    key = jax.random.PRNGKey(0)
    k0, k1, k2, kp = jax.random.split(key, 4)

    # NCHW inputs, matching the PyTorch module's layout
    x_level_0 = jax.random.normal(k0, (N, dim[0], H // 4, W // 4), jnp.float32)
    x_level_1 = jax.random.normal(k1, (N, dim[1], H // 2, W // 2), jnp.float32)
    x_level_2 = jax.random.normal(k2, (N, dim[2], H, W), jnp.float32)

    params = make_params(kp, dim)

    out = asff_level2_forward(x_level_0, x_level_1, x_level_2, params)
    out = jax.block_until_ready(out)

    ref = jax.block_until_ready(ref_forward(x_level_0, x_level_1, x_level_2, params))
    assert out.shape == (N, dim[1], H, W), out.shape
    assert jnp.allclose(out, ref, rtol=2e-4, atol=2e-4), float(jnp.max(jnp.abs(out - ref)))
    print("KERNEL_OK")
</pallas_src>

<mosaic_0001>
module attributes {stable_mosaic.version = 11 : i64} {
  func.func @kernel(%arg0: i32, %arg1: memref<1x16x16xf32, #tpu.memory_space<vmem>>, %arg2: memref<1x8x64xf32, #tpu.memory_space<vmem>>, %arg3: memref<1x8x256xf32, #tpu.memory_space<vmem>>, %arg4: memref<16x256xf32, #tpu.memory_space<vmem>>, %arg5: memref<64x256xf32, #tpu.memory_space<vmem>>, %arg6: memref<8x256xf32, #tpu.memory_space<vmem>>, %arg7: memref<8x16xf32, #tpu.memory_space<vmem>>, %arg8: memref<8x1xf32, #tpu.memory_space<vmem>>, %arg9: memref<8x8xf32, #tpu.memory_space<vmem>>, %arg10: memref<8x1xf32, #tpu.memory_space<vmem>>, %arg11: memref<48x24xf32, #tpu.memory_space<vmem>>, %arg12: memref<48x1xf32, #tpu.memory_space<vmem>>, %arg13: memref<8x48xf32, #tpu.memory_space<vmem>>, %arg14: memref<8x1xf32, #tpu.memory_space<vmem>>, %arg15: memref<8x72xf32, #tpu.memory_space<vmem>>, %arg16: memref<8x1xf32, #tpu.memory_space<vmem>>, %arg17: memref<1x8x256xf32, #tpu.memory_space<vmem>>) attributes {dimension_semantics = [#tpu.dimension_semantics<parallel>], iteration_bounds = array<i64: 2>, scalar_prefetch = 0 : i64, scratch_operands = 0 : i64, tpu.core_type = #tpu.core_type<tc>, window_params = [{transform_indices = @transform_0, window_bounds = array<i64: 1, 16, 16>}, {transform_indices = @transform_1, window_bounds = array<i64: 1, 8, 64>}, {transform_indices = @transform_2, window_bounds = array<i64: 1, 8, 256>}, {pipeline_mode = #tpu.pipeline_mode<synchronous>, transform_indices = @transform_3, window_bounds = array<i64: 16, 256>}, {pipeline_mode = #tpu.pipeline_mode<synchronous>, transform_indices = @transform_4, window_bounds = array<i64: 64, 256>}, {pipeline_mode = #tpu.pipeline_mode<synchronous>, transform_indices = @transform_5, window_bounds = array<i64: 8, 256>}, {pipeline_mode = #tpu.pipeline_mode<synchronous>, transform_indices = @transform_6, window_bounds = array<i64: 8, 16>}, {pipeline_mode = #tpu.pipeline_mode<synchronous>, transform_indices = @transform_7, window_bounds = array<i64: 8, 1>}, {pipeline_mode = #tpu.pipeline_mode<synchronous>, transform_indices = @transform_8, window_bounds = array<i64: 8, 8>}, {pipeline_mode = #tpu.pipeline_mode<synchronous>, transform_indices = @transform_9, window_bounds = array<i64: 8, 1>}, {pipeline_mode = #tpu.pipeline_mode<synchronous>, transform_indices = @transform_10, window_bounds = array<i64: 48, 24>}, {pipeline_mode = #tpu.pipeline_mode<synchronous>, transform_indices = @transform_11, window_bounds = array<i64: 48, 1>}, {pipeline_mode = #tpu.pipeline_mode<synchronous>, transform_indices = @transform_12, window_bounds = array<i64: 8, 48>}, {pipeline_mode = #tpu.pipeline_mode<synchronous>, transform_indices = @transform_13, window_bounds = array<i64: 8, 1>}, {pipeline_mode = #tpu.pipeline_mode<synchronous>, transform_indices = @transform_14, window_bounds = array<i64: 8, 72>}, {pipeline_mode = #tpu.pipeline_mode<synchronous>, transform_indices = @transform_15, window_bounds = array<i64: 8, 1>}, {transform_indices = @transform_16, window_bounds = array<i64: 1, 8, 256>}]} {
    %c0 = arith.constant 0 : index
    %c0_0 = arith.constant 0 : index
    %0 = vector.load %arg7[%c0, %c0_0] : memref<8x16xf32, #tpu.memory_space<vmem>>, vector<8x16xf32>
    %c0_1 = arith.constant 0 : index
    %c0_2 = arith.constant 0 : index
    %c0_3 = arith.constant 0 : index
    %1 = vector.load %arg1[%c0_1, %c0_2, %c0_3] : memref<1x16x16xf32, #tpu.memory_space<vmem>>, vector<1x16x16xf32>
    %2 = vector.shape_cast %1 : vector<1x16x16xf32> to vector<16x16xf32>
    %cst = arith.constant dense<0.000000e+00> : vector<8x16xf32>
    %3 = tpu.matmul %0, %2, %cst {dimension_numbers = #tpu.dot_dimension_numbers<[1], [0], [0], [1], [0, 0, 1, 1], [], []>} : vector<8x16xf32>, vector<16x16xf32>, vector<8x16xf32> -> vector<8x16xf32>
    %c0_4 = arith.constant 0 : index
    %c0_5 = arith.constant 0 : index
    %4 = vector.load %arg8[%c0_4, %c0_5] : memref<8x1xf32, #tpu.memory_space<vmem>>, vector<8x1xf32>
    %5 = vector.broadcast %4 : vector<8x1xf32> to vector<8x16xf32>
    %6 = arith.addf %3, %5 : vector<8x16xf32>
    %cst_6 = arith.constant 0.000000e+00 : f32
    %cst_7 = arith.constant 6.000000e+00 : f32
    %7 = vector.broadcast %cst_6 : f32 to vector<8x16xf32>
    %8 = arith.maximumf %7, %6 : vector<8x16xf32>
    %9 = vector.broadcast %cst_7 : f32 to vector<8x16xf32>
    %10 = arith.minimumf %9, %8 : vector<8x16xf32>
    %c0_8 = arith.constant 0 : index
    %c0_9 = arith.constant 0 : index
    %11 = vector.load %arg4[%c0_8, %c0_9] : memref<16x256xf32, #tpu.memory_space<vmem>>, vector<16x256xf32>
    %cst_10 = arith.constant dense<0.000000e+00> : vector<8x256xf32>
    %12 = tpu.matmul %10, %11, %cst_10 {dimension_numbers = #tpu.dot_dimension_numbers<[1], [0], [0], [1], [0, 0, 1, 1], [], []>} : vector<8x16xf32>, vector<16x256xf32>, vector<8x256xf32> -> vector<8x256xf32>
    %c0_11 = arith.constant 0 : index
    %c0_12 = arith.constant 0 : index
    %13 = vector.load %arg9[%c0_11, %c0_12] : memref<8x8xf32, #tpu.memory_space<vmem>>, vector<8x8xf32>
    %c0_13 = arith.constant 0 : index
    %c0_14 = arith.constant 0 : index
    %c0_15 = arith.constant 0 : index
    %14 = vector.load %arg2[%c0_13, %c0_14, %c0_15] : memref<1x8x64xf32, #tpu.memory_space<vmem>>, vector<1x8x64xf32>
    %15 = vector.shape_cast %14 : vector<1x8x64xf32> to vector<8x64xf32>
    %cst_16 = arith.constant dense<0.000000e+00> : vector<8x64xf32>
    %16 = tpu.matmul %13, %15, %cst_16 {dimension_numbers = #tpu.dot_dimension_numbers<[1], [0], [0], [1], [0, 0, 1, 1], [], []>} : vector<8x8xf32>, vector<8x64xf32>, vector<8x64xf32> -> vector<8x64xf32>
    %c0_17 = arith.constant 0 : index
    %c0_18 = arith.constant 0 : index
    %17 = vector.load %arg10[%c0_17, %c0_18] : memref<8x1xf32, #tpu.memory_space<vmem>>, vector<8x1xf32>
    %18 = vector.broadcast %17 : vector<8x1xf32> to vector<8x64xf32>
    %19 = arith.addf %16, %18 : vector<8x64xf32>
    %cst_19 = arith.constant 0.000000e+00 : f32
    %cst_20 = arith.constant 6.000000e+00 : f32
    %20 = vector.broadcast %cst_19 : f32 to vector<8x64xf32>
    %21 = arith.maximumf %20, %19 : vector<8x64xf32>
    %22 = vector.broadcast %cst_20 : f32 to vector<8x64xf32>
    %23 = arith.minimumf %22, %21 : vector<8x64xf32>
    %c0_21 = arith.constant 0 : index
    %c0_22 = arith.constant 0 : index
    %24 = vector.load %arg5[%c0_21, %c0_22] : memref<64x256xf32, #tpu.memory_space<vmem>>, vector<64x256xf32>
    %cst_23 = arith.constant dense<0.000000e+00> : vector<8x256xf32>
    %25 = tpu.matmul %23, %24, %cst_23 {dimension_numbers = #tpu.dot_dimension_numbers<[1], [0], [0], [1], [0, 0, 1, 1], [], []>} : vector<8x64xf32>, vector<64x256xf32>, vector<8x256xf32> -> vector<8x256xf32>
    %c0_24 = arith.constant 0 : index
    %c0_25 = arith.constant 0 : index
    %c0_26 = arith.constant 0 : index
    %26 = vector.load %arg3[%c0_24, %c0_25, %c0_26] : memref<1x8x256xf32, #tpu.memory_space<vmem>>, vector<1x8x256xf32>
    %27 = vector.shape_cast %26 : vector<1x8x256xf32> to vector<8x256xf32>
    %28 = tpu.concatenate %12, %25, %27 in 0 : vector<8x256xf32>, vector<8x256xf32>, vector<8x256xf32> -> vector<24x256xf32>
    %c0_27 = arith.constant 0 : index
    %c0_28 = arith.constant 0 : index
    %29 = vector.load %arg11[%c0_27, %c0_28] : memref<48x24xf32, #tpu.memory_space<vmem>>, vector<48x24xf32>
    %cst_29 = arith.constant dense<0.000000e+00> : vector<48x256xf32>
    %30 = tpu.matmul %29, %28, %cst_29 {dimension_numbers = #tpu.dot_dimension_numbers<[1], [0], [0], [1], [0, 0, 1, 1], [], []>} : vector<48x24xf32>, vector<24x256xf32>, vector<48x256xf32> -> vector<48x256xf32>
    %c0_30 = arith.constant 0 : index
    %c0_31 = arith.constant 0 : index
    %31 = vector.load %arg12[%c0_30, %c0_31] : memref<48x1xf32, #tpu.memory_space<vmem>>, vector<48x1xf32>
    %32 = vector.broadcast %31 : vector<48x1xf32> to vector<48x256xf32>
    %33 = arith.addf %30, %32 : vector<48x256xf32>
    %cst_32 = arith.constant 0.000000e+00 : f32
    %cst_33 = arith.constant 6.000000e+00 : f32
    %34 = vector.broadcast %cst_32 : f32 to vector<48x256xf32>
    %35 = arith.maximumf %34, %33 : vector<48x256xf32>
    %36 = vector.broadcast %cst_33 : f32 to vector<48x256xf32>
    %37 = arith.minimumf %36, %35 : vector<48x256xf32>
    %c0_34 = arith.constant 0 : index
    %c0_35 = arith.constant 0 : index
    %38 = vector.load %arg13[%c0_34, %c0_35] : memref<8x48xf32, #tpu.memory_space<vmem>>, vector<8x48xf32>
    %cst_36 = arith.constant dense<0.000000e+00> : vector<8x256xf32>
    %39 = tpu.matmul %38, %37, %cst_36 {dimension_numbers = #tpu.dot_dimension_numbers<[1], [0], [0], [1], [0, 0, 1, 1], [], []>} : vector<8x48xf32>, vector<48x256xf32>, vector<8x256xf32> -> vector<8x256xf32>
    %c0_37 = arith.constant 0 : index
    %c0_38 = arith.constant 0 : index
    %40 = vector.load %arg14[%c0_37, %c0_38] : memref<8x1xf32, #tpu.memory_space<vmem>>, vector<8x1xf32>
    %41 = vector.broadcast %40 : vector<8x1xf32> to vector<8x256xf32>
    %42 = arith.addf %39, %41 : vector<8x256xf32>
    %43 = vector.extract_strided_slice %42 {offsets = [0, 0], sizes = [1, 256], strides = [1, 1]} : vector<8x256xf32> to vector<1x256xf32>
    %44 = vector.extract_strided_slice %42 {offsets = [1, 0], sizes = [1, 256], strides = [1, 1]} : vector<8x256xf32> to vector<1x256xf32>
    %45 = vector.extract_strided_slice %42 {offsets = [2, 0], sizes = [1, 256], strides = [1, 1]} : vector<8x256xf32> to vector<1x256xf32>
    %46 = arith.maximumf %43, %44 : vector<1x256xf32>
    %47 = arith.maximumf %46, %45 : vector<1x256xf32>
    %48 = arith.subf %43, %47 : vector<1x256xf32>
    %49 = math.exp %48 : vector<1x256xf32>
    %50 = arith.subf %44, %47 : vector<1x256xf32>
    %51 = math.exp %50 : vector<1x256xf32>
    %52 = arith.subf %45, %47 : vector<1x256xf32>
    %53 = math.exp %52 : vector<1x256xf32>
    %54 = arith.addf %49, %51 : vector<1x256xf32>
    %55 = arith.addf %54, %53 : vector<1x256xf32>
    %cst_39 = arith.constant 1.000000e+00 : f32
    %56 = vector.broadcast %cst_39 : f32 to vector<1x256xf32>
    %57 = arith.divf %56, %55 : vector<1x256xf32>
    %58 = arith.mulf %49, %57 : vector<1x256xf32>
    %59 = vector.broadcast %58 : vector<1x256xf32> to vector<8x256xf32>
    %60 = arith.mulf %12, %59 : vector<8x256xf32>
    %61 = arith.mulf %51, %57 : vector<1x256xf32>
    %62 = vector.broadcast %61 : vector<1x256xf32> to vector<8x256xf32>
    %63 = arith.mulf %25, %62 : vector<8x256xf32>
    %64 = arith.addf %60, %63 : vector<8x256xf32>
    %65 = arith.mulf %53, %57 : vector<1x256xf32>
    %66 = vector.broadcast %65 : vector<1x256xf32> to vector<8x256xf32>
    %67 = arith.mulf %27, %66 : vector<8x256xf32>
    %68 = arith.addf %64, %67 : vector<8x256xf32>
    %c0_40 = arith.constant 0 : index
    %c0_41 = arith.constant 0 : index
    %69 = vector.load %arg6[%c0_40, %c0_41] : memref<8x256xf32, #tpu.memory_space<vmem>>, vector<8x256xf32>
    %c17_i32 = arith.constant 17 : i32
    %70 = tpu.dynamic_rotate %68 by %c17_i32 dim 1 : vector<8x256xf32>, i32 -> vector<8x256xf32>
    %71 = vector.extract_strided_slice %69 {offsets = [0, 0], sizes = [1, 256], strides = [1, 1]} : vector<8x256xf32> to vector<1x256xf32>
    %72 = vector.broadcast %71 : vector<1x256xf32> to vector<8x256xf32>
    %73 = arith.mulf %70, %72 : vector<8x256xf32>
    %c16_i32 = arith.constant 16 : i32
    %74 = tpu.dynamic_rotate %68 by %c16_i32 dim 1 : vector<8x256xf32>, i32 -> vector<8x256xf32>
    %75 = vector.extract_strided_slice %69 {offsets = [1, 0], sizes = [1, 256], strides = [1, 1]} : vector<8x256xf32> to vector<1x256xf32>
    %76 = vector.broadcast %75 : vector<1x256xf32> to vector<8x256xf32>
    %77 = arith.mulf %74, %76 : vector<8x256xf32>
    %c15_i32 = arith.constant 15 : i32
    %78 = tpu.dynamic_rotate %68 by %c15_i32 dim 1 : vector<8x256xf32>, i32 -> vector<8x256xf32>
    %79 = vector.extract_strided_slice %69 {offsets = [2, 0], sizes = [1, 256], strides = [1, 1]} : vector<8x256xf32> to vector<1x256xf32>
    %80 = vector.broadcast %79 : vector<1x256xf32> to vector<8x256xf32>
    %81 = arith.mulf %78, %80 : vector<8x256xf32>
    %c1_i32 = arith.constant 1 : i32
    %82 = tpu.dynamic_rotate %68 by %c1_i32 dim 1 : vector<8x256xf32>, i32 -> vector<8x256xf32>
    %83 = vector.extract_strided_slice %69 {offsets = [3, 0], sizes = [1, 256], strides = [1, 1]} : vector<8x256xf32> to vector<1x256xf32>
    %84 = vector.broadcast %83 : vector<1x256xf32> to vector<8x256xf32>
    %85 = arith.mulf %82, %84 : vector<8x256xf32>
    %c255_i32 = arith.constant 255 : i32
    %86 = tpu.dynamic_rotate %68 by %c255_i32 dim 1 : vector<8x256xf32>, i32 -> vector<8x256xf32>
    %87 = vector.extract_strided_slice %69 {offsets = [4, 0], sizes = [1, 256], strides = [1, 1]} : vector<8x256xf32> to vector<1x256xf32>
    %88 = vector.broadcast %87 : vector<1x256xf32> to vector<8x256xf32>
    %89 = arith.mulf %86, %88 : vector<8x256xf32>
    %c241_i32 = arith.constant 241 : i32
    %90 = tpu.dynamic_rotate %68 by %c241_i32 dim 1 : vector<8x256xf32>, i32 -> vector<8x256xf32>
    %91 = vector.extract_strided_slice %69 {offsets = [5, 0], sizes = [1, 256], strides = [1, 1]} : vector<8x256xf32> to vector<1x256xf32>
    %92 = vector.broadcast %91 : vector<1x256xf32> to vector<8x256xf32>
    %93 = arith.mulf %90, %92 : vector<8x256xf32>
    %c240_i32 = arith.constant 240 : i32
    %94 = tpu.dynamic_rotate %68 by %c240_i32 dim 1 : vector<8x256xf32>, i32 -> vector<8x256xf32>
    %95 = vector.extract_strided_slice %69 {offsets = [6, 0], sizes = [1, 256], strides = [1, 1]} : vector<8x256xf32> to vector<1x256xf32>
    %96 = vector.broadcast %95 : vector<1x256xf32> to vector<8x256xf32>
    %97 = arith.mulf %94, %96 : vector<8x256xf32>
    %c239_i32 = arith.constant 239 : i32
    %98 = tpu.dynamic_rotate %68 by %c239_i32 dim 1 : vector<8x256xf32>, i32 -> vector<8x256xf32>
    %99 = vector.extract_strided_slice %69 {offsets = [7, 0], sizes = [1, 256], strides = [1, 1]} : vector<8x256xf32> to vector<1x256xf32>
    %100 = vector.broadcast %99 : vector<1x256xf32> to vector<8x256xf32>
    %101 = arith.mulf %98, %100 : vector<8x256xf32>
    %102 = tpu.concatenate %73, %77, %81, %85, %68, %89, %93, %97, %101 in 0 : vector<8x256xf32>, vector<8x256xf32>, vector<8x256xf32>, vector<8x256xf32>, vector<8x256xf32>, vector<8x256xf32>, vector<8x256xf32>, vector<8x256xf32>, vector<8x256xf32> -> vector<72x256xf32>
    %c0_42 = arith.constant 0 : index
    %c0_43 = arith.constant 0 : index
    %103 = vector.load %arg15[%c0_42, %c0_43] : memref<8x72xf32, #tpu.memory_space<vmem>>, vector<8x72xf32>
    %cst_44 = arith.constant dense<0.000000e+00> : vector<8x256xf32>
    %104 = tpu.matmul %103, %102, %cst_44 {dimension_numbers = #tpu.dot_dimension_numbers<[1], [0], [0], [1], [0, 0, 1, 1], [], []>} : vector<8x72xf32>, vector<72x256xf32>, vector<8x256xf32> -> vector<8x256xf32>
    %c0_45 = arith.constant 0 : index
    %c0_46 = arith.constant 0 : index
    %105 = vector.load %arg16[%c0_45, %c0_46] : memref<8x1xf32, #tpu.memory_space<vmem>>, vector<8x1xf32>
    %106 = vector.broadcast %105 : vector<8x1xf32> to vector<8x256xf32>
    %107 = arith.addf %104, %106 : vector<8x256xf32>
    %cst_47 = arith.constant 0.000000e+00 : f32
    %cst_48 = arith.constant 6.000000e+00 : f32
    %108 = vector.broadcast %cst_47 : f32 to vector<8x256xf32>
    %109 = arith.maximumf %108, %107 : vector<8x256xf32>
    %110 = vector.broadcast %cst_48 : f32 to vector<8x256xf32>
    %111 = arith.minimumf %110, %109 : vector<8x256xf32>
    %c0_49 = arith.constant 0 : index
    %c0_50 = arith.constant 0 : index
    %c0_51 = arith.constant 0 : index
    %112 = vector.load %arg17[%c0_49, %c0_50, %c0_51] : memref<1x8x256xf32, #tpu.memory_space<vmem>>, vector<1x8x256xf32>
    %113 = vector.shape_cast %112 : vector<1x8x256xf32> to vector<8x256xf32>
    %114 = vector.shape_cast %111 : vector<8x256xf32> to vector<1x8x256xf32>
    tpu.vector_store %arg17[%c0_49, %c0_50, %c0_51], %114 {strides = array<i32>} : memref<1x8x256xf32, #tpu.memory_space<vmem>>, vector<1x8x256xf32>,
    return
  }
  func.func @transform_0(%arg0: i32) -> (i32, i32, i32) {
    %c0_i32 = arith.constant 0 : i32
    %c0_i32_0 = arith.constant 0 : i32
    %c0_i32_1 = arith.constant 0 : i32
    return %arg0, %c0_i32, %c0_i32_0 : i32, i32, i32
  }
  func.func @transform_1(%arg0: i32) -> (i32, i32, i32) {
    %c0_i32 = arith.constant 0 : i32
    %c0_i32_0 = arith.constant 0 : i32
    %c0_i32_1 = arith.constant 0 : i32
    return %arg0, %c0_i32, %c0_i32_0 : i32, i32, i32
  }
  func.func @transform_2(%arg0: i32) -> (i32, i32, i32) {
    %c0_i32 = arith.constant 0 : i32
    %c0_i32_0 = arith.constant 0 : i32
    %c0_i32_1 = arith.constant 0 : i32
    return %arg0, %c0_i32, %c0_i32_0 : i32, i32, i32
  }
  func.func @transform_3(%arg0: i32) -> (i32, i32) {
    %c0_i32 = arith.constant 0 : i32
    %c0_i32_0 = arith.constant 0 : i32
    %c0_i32_1 = arith.constant 0 : i32
    return %c0_i32, %c0_i32_0 : i32, i32
  }
  func.func @transform_4(%arg0: i32) -> (i32, i32) {
    %c0_i32 = arith.constant 0 : i32
    %c0_i32_0 = arith.constant 0 : i32
    %c0_i32_1 = arith.constant 0 : i32
    return %c0_i32, %c0_i32_0 : i32, i32
  }
  func.func @transform_5(%arg0: i32) -> (i32, i32) {
    %c0_i32 = arith.constant 0 : i32
    %c0_i32_0 = arith.constant 0 : i32
    %c0_i32_1 = arith.constant 0 : i32
    return %c0_i32, %c0_i32_0 : i32, i32
  }
  func.func @transform_6(%arg0: i32) -> (i32, i32) {
    %c0_i32 = arith.constant 0 : i32
    %c0_i32_0 = arith.constant 0 : i32
    %c0_i32_1 = arith.constant 0 : i32
    return %c0_i32, %c0_i32_0 : i32, i32
  }
  func.func @transform_7(%arg0: i32) -> (i32, i32) {
    %c0_i32 = arith.constant 0 : i32
    %c0_i32_0 = arith.constant 0 : i32
    %c0_i32_1 = arith.constant 0 : i32
    return %c0_i32, %c0_i32_0 : i32, i32
  }
  func.func @transform_8(%arg0: i32) -> (i32, i32) {
    %c0_i32 = arith.constant 0 : i32
    %c0_i32_0 = arith.constant 0 : i32
    %c0_i32_1 = arith.constant 0 : i32
    return %c0_i32, %c0_i32_0 : i32, i32
  }
  func.func @transform_9(%arg0: i32) -> (i32, i32) {
    %c0_i32 = arith.constant 0 : i32
    %c0_i32_0 = arith.constant 0 : i32
    %c0_i32_1 = arith.constant 0 : i32
    return %c0_i32, %c0_i32_0 : i32, i32
  }
  func.func @transform_10(%arg0: i32) -> (i32, i32) {
    %c0_i32 = arith.constant 0 : i32
    %c0_i32_0 = arith.constant 0 : i32
    %c0_i32_1 = arith.constant 0 : i32
    return %c0_i32, %c0_i32_0 : i32, i32
  }
  func.func @transform_11(%arg0: i32) -> (i32, i32) {
    %c0_i32 = arith.constant 0 : i32
    %c0_i32_0 = arith.constant 0 : i32
    %c0_i32_1 = arith.constant 0 : i32
    return %c0_i32, %c0_i32_0 : i32, i32
  }
  func.func @transform_12(%arg0: i32) -> (i32, i32) {
    %c0_i32 = arith.constant 0 : i32
    %c0_i32_0 = arith.constant 0 : i32
    %c0_i32_1 = arith.constant 0 : i32
    return %c0_i32, %c0_i32_0 : i32, i32
  }
  func.func @transform_13(%arg0: i32) -> (i32, i32) {
    %c0_i32 = arith.constant 0 : i32
    %c0_i32_0 = arith.constant 0 : i32
    %c0_i32_1 = arith.constant 0 : i32
    return %c0_i32, %c0_i32_0 : i32, i32
  }
  func.func @transform_14(%arg0: i32) -> (i32, i32) {
    %c0_i32 = arith.constant 0 : i32
    %c0_i32_0 = arith.constant 0 : i32
    %c0_i32_1 = arith.constant 0 : i32
    return %c0_i32, %c0_i32_0 : i32, i32
  }
  func.func @transform_15(%arg0: i32) -> (i32, i32) {
    %c0_i32 = arith.constant 0 : i32
    %c0_i32_0 = arith.constant 0 : i32
    %c0_i32_1 = arith.constant 0 : i32
    return %c0_i32, %c0_i32_0 : i32, i32
  }
  func.func @transform_16(%arg0: i32) -> (i32, i32, i32) {
    %c0_i32 = arith.constant 0 : i32
    %c0_i32_0 = arith.constant 0 : i32
    %c0_i32_1 = arith.constant 0 : i32
    return %arg0, %c0_i32, %c0_i32_0 : i32, i32, i32
  }
}

</mosaic_0001>

<llo_original>
// kernel: asff_level2_forward.1
$region0: #{asff_level2_forward.1}
  #allocation0 [shape = 'u32[]', space=smem, size = 0x4, offset = 0x4, fixed_abs, tag = 'smem constant byte address 0x4 - core index']
  #allocation1 [shape = 'u32[72,128]{1,0:T(1,128)}', space=vmem, size = 0x9000, scoped, tag = 'internal scratch']
  %s0 = inlined_call_operand.vmem [shape: f32[2,16,16], index: 0, kind: input, shape index: {}]
  %s1 = inlined_call_operand.vmem [shape: f32[2,8,64], index: 1, kind: input, shape index: {}]
  %s2 = inlined_call_operand.vmem [shape: f32[2,8,256], index: 2, kind: input, shape index: {}]
  %s3 = inlined_call_operand.vmem [shape: f32[16,256], index: 3, kind: input, shape index: {}]
  %s4 = inlined_call_operand.vmem [shape: f32[64,256], index: 4, kind: input, shape index: {}]
  %s5 = inlined_call_operand.vmem [shape: f32[8,256], index: 5, kind: input, shape index: {}]
  %s6 = inlined_call_operand.vmem [shape: f32[8,16], index: 6, kind: input, shape index: {}]
  %s7 = inlined_call_operand.vmem [shape: f32[8,1], index: 7, kind: input, shape index: {}]
  %s8 = inlined_call_operand.vmem [shape: f32[8,8], index: 8, kind: input, shape index: {}]
  %s9 = inlined_call_operand.vmem [shape: f32[8,1], index: 9, kind: input, shape index: {}]
  %s10 = inlined_call_operand.vmem [shape: f32[48,24], index: 10, kind: input, shape index: {}]
  %s11 = inlined_call_operand.vmem [shape: f32[48,1], index: 11, kind: input, shape index: {}]
  %s12 = inlined_call_operand.vmem [shape: f32[8,48], index: 12, kind: input, shape index: {}]
  %s13 = inlined_call_operand.vmem [shape: f32[8,1], index: 13, kind: input, shape index: {}]
  %s14 = inlined_call_operand.vmem [shape: f32[8,72], index: 14, kind: input, shape index: {}]
  %s15 = inlined_call_operand.vmem [shape: f32[8,1], index: 15, kind: input, shape index: {}]
  %s16 = inlined_call_operand.vmem [shape: f32[2,8,256], index: 16, kind: output, shape index: {}]
  %s17 = sld [smem:[#allocation0]]
  $region97: #{asff_level2_forward.1} parent=0
    _
  %s19 = ssub.s32 1, %s17
  %s20 = scalar_select 0, %s19, %s17
  loop: start=0, step=1, limit=4
  $region2: #{asff_level2_forward.1} parent=0 // loop_pre_header
    _
  $region3: #{asff_level2_forward.1} parent=0 // loop_header
    %s22 = sphi 0, %s26
    %p23 = scmp.ge.s32.totalorder %s22, 4
    %s32 = sphi 0, %s34
    %s35 = sphi 0, %s32
    %s36 = sphi 0, %s35
    %s52 = sphi 0, %s36
    %s58 = sphi 0, %s60
    %s61 = sphi 0, %s58
    %s62 = sphi 0, %s61
    %s78 = sphi 0, %s62
    %s84 = sphi 0, %s86
    %s87 = sphi 0, %s84
    %s88 = sphi 0, %s87
    %s104 = sphi 0, %s88
    %s108 = sphi 0, %s108
    %s110 = sphi 0, %s108
    %s111 = sphi 0, %s110
    %s125 = sphi 0, %s111
    %s129 = sphi 0, %s129
    %s131 = sphi 0, %s129
    %s132 = sphi 0, %s131
    %s146 = sphi 0, %s132
    %s150 = sphi 0, %s150
    %s152 = sphi 0, %s150
    %s153 = sphi 0, %s152
    %s167 = sphi 0, %s153
    %s171 = sphi 0, %s171
    %s173 = sphi 0, %s171
    %s174 = sphi 0, %s173
    %s188 = sphi 0, %s174
    %s192 = sphi 0, %s192
    %s194 = sphi 0, %s192
    %s195 = sphi 0, %s194
    %s209 = sphi 0, %s195
    %s213 = sphi 0, %s213
    %s215 = sphi 0, %s213
    %s216 = sphi 0, %s215
    %s230 = sphi 0, %s216
    %s234 = sphi 0, %s234
    %s236 = sphi 0, %s234
    %s237 = sphi 0, %s236
    %s251 = sphi 0, %s237
    %s255 = sphi 0, %s255
    %s257 = sphi 0, %s255
    %s258 = sphi 0, %s257
    %s272 = sphi 0, %s258
    %s276 = sphi 0, %s276
    %s278 = sphi 0, %s276
    %s279 = sphi 0, %s278
    %s293 = sphi 0, %s279
    %s297 = sphi 0, %s297
    %s299 = sphi 0, %s297
    %s300 = sphi 0, %s299
    %s314 = sphi 0, %s300
    %s318 = sphi 0, %s318
    %s320 = sphi 0, %s318
    %s321 = sphi 0, %s320
    %s335 = sphi 0, %s321
    %s339 = sphi 0, %s339
    %s341 = sphi 0, %s339
    %s342 = sphi 0, %s341
    %s356 = sphi 0, %s342
    %s360 = sphi 0, %s360
    %s362 = sphi 0, %s360
    %s363 = sphi 0, %s362
    %s377 = sphi 0, %s363
    %s383 = sphi 0, %s385
    %s386 = sphi 0, %s383
    %s387 = sphi 0, %s386
    %s403 = sphi 0, %s387
  $region4: #{asff_level2_forward.1} parent=0 // loop_header_branch
    %25 = sbr.rel (%p23) target = $region8
  $region5: #{asff_level2_forward.1} parent=0 // loop_body
    %s27 = ssub.s32 %s22, 1
    %s28 = ssub.s32 %s22, 2
    %s29 = sadd.s32 %s22, 1
    %s30 = ssub.s32 %s22, %s29
    %p31 = scmp.eq.s32.totalorder %s30, 0
    %s33 = sadd.s32 %s32, 1
    %s34 = scalar_select %p31, %s32, %s33
    %p37 = pneg %p31
    %p38 = scmp.eq.s32.totalorder %s22, 1
    %p39 = por %p37, %p38
    %p40 = scmp.ne.s32.totalorder %s32, %s35
    %p41 = scmp.eq.s32.totalorder %s22, 0
    %p42 = por %p40, %p41
    %p43 = scmp.ne.s32.totalorder %s32, %s35
    %p44 = scmp.eq.s32.totalorder %s27, 1
    %p45 = por %p43, %p44
    %p46 = scmp.ne.s32.totalorder %s35, %s36
    %p47 = scmp.eq.s32.totalorder %s27, 0
    %p48 = por %p46, %p47
    %p49 = scmp.ne.s32.totalorder %s35, %s36
    %p50 = scmp.eq.s32.totalorder %s28, 1
    %p51 = por %p49, %p50
    %p53 = scmp.ne.s32.totalorder %s36, %s52
    %p54 = scmp.eq.s32.totalorder %s28, 0
    %p55 = por %p53, %p54
    %s56 = ssub.s32 %s22, %s29
    %p57 = scmp.eq.s32.totalorder %s56, 0
    %s59 = sadd.s32 %s58, 1
    %s60 = scalar_select %p57, %s58, %s59
    %p63 = pneg %p57
    %p64 = scmp.eq.s32.totalorder %s22, 1
    %p65 = por %p63, %p64
    %p66 = scmp.ne.s32.totalorder %s58, %s61
    %p67 = scmp.eq.s32.totalorder %s22, 0
    %p68 = por %p66, %p67
    %p69 = scmp.ne.s32.totalorder %s58, %s61
    %p70 = scmp.eq.s32.totalorder %s27, 1
    %p71 = por %p69, %p70
    %p72 = scmp.ne.s32.totalorder %s61, %s62
    %p73 = scmp.eq.s32.totalorder %s27, 0
    %p74 = por %p72, %p73
    %p75 = scmp.ne.s32.totalorder %s61, %s62
    %p76 = scmp.eq.s32.totalorder %s28, 1
    %p77 = por %p75, %p76
    %p79 = scmp.ne.s32.totalorder %s62, %s78
    %p80 = scmp.eq.s32.totalorder %s28, 0
    %p81 = por %p79, %p80
    %s82 = ssub.s32 %s22, %s29
    %p83 = scmp.eq.s32.totalorder %s82, 0
    %s85 = sadd.s32 %s84, 1
    %s86 = scalar_select %p83, %s84, %s85
    %p89 = pneg %p83
    %p90 = scmp.eq.s32.totalorder %s22, 1
    %p91 = por %p89, %p90
    %p92 = scmp.ne.s32.totalorder %s84, %s87
    %p93 = scmp.eq.s32.totalorder %s22, 0
    %p94 = por %p92, %p93
    %p95 = scmp.ne.s32.totalorder %s84, %s87
    %p96 = scmp.eq.s32.totalorder %s27, 1
    %p97 = por %p95, %p96
    %p98 = scmp.ne.s32.totalorder %s87, %s88
    %p99 = scmp.eq.s32.totalorder %s27, 0
    %p100 = por %p98, %p99
    %p101 = scmp.ne.s32.totalorder %s87, %s88
    %p102 = scmp.eq.s32.totalorder %s28, 1
    %p103 = por %p101, %p102
    %p105 = scmp.ne.s32.totalorder %s88, %s104
    %p106 = scmp.eq.s32.totalorder %s28, 0
    %p107 = por %p105, %p106
    %s109 = sadd.s32 %s108, 1
    %p112 = scmp.eq.s32.totalorder %s22, 1
    %p113 = scmp.ne.s32.totalorder %s108, %s110
    %p114 = scmp.eq.s32.totalorder %s22, 0
    %p115 = por %p113, %p114
    %p116 = scmp.ne.s32.totalorder %s108, %s110
    %p117 = scmp.eq.s32.totalorder %s27, 1
    %p118 = por %p116, %p117
    %p119 = scmp.ne.s32.totalorder %s110, %s111
    %p120 = scmp.eq.s32.totalorder %s27, 0
    %p121 = por %p119, %p120
    %p122 = scmp.ne.s32.totalorder %s110, %s111
    %p123 = scmp.eq.s32.totalorder %s28, 1
    %p124 = por %p122, %p123
    %p126 = scmp.ne.s32.totalorder %s111, %s125
    %p127 = scmp.eq.s32.totalorder %s28, 0
    %p128 = por %p126, %p127
    %s130 = sadd.s32 %s129, 1
    %p133 = scmp.eq.s32.totalorder %s22, 1
    %p134 = scmp.ne.s32.totalorder %s129, %s131
    %p135 = scmp.eq.s32.totalorder %s22, 0
    %p136 = por %p134, %p135
    %p137 = scmp.ne.s32.totalorder %s129, %s131
    %p138 = scmp.eq.s32.totalorder %s27, 1
    %p139 = por %p137, %p138
    %p140 = scmp.ne.s32.totalorder %s131, %s132
    %p141 = scmp.eq.s32.totalorder %s27, 0
    %p142 = por %p140, %p141
    %p143 = scmp.ne.s32.totalorder %s131, %s132
    %p144 = scmp.eq.s32.totalorder %s28, 1
    %p145 = por %p143, %p144
    %p147 = scmp.ne.s32.totalorder %s132, %s146
    %p148 = scmp.eq.s32.totalorder %s28, 0
    %p149 = por %p147, %p148
    %s151 = sadd.s32 %s150, 1
    %p154 = scmp.eq.s32.totalorder %s22, 1
    %p155 = scmp.ne.s32.totalorder %s150, %s152
    %p156 = scmp.eq.s32.totalorder %s22, 0
    %p157 = por %p155, %p156
    %p158 = scmp.ne.s32.totalorder %s150, %s152
    %p159 = scmp.eq.s32.totalorder %s27, 1
    %p160 = por %p158, %p159
    %p161 = scmp.ne.s32.totalorder %s152, %s153
    %p162 = scmp.eq.s32.totalorder %s27, 0
    %p163 = por %p161, %p162
    %p164 = scmp.ne.s32.totalorder %s152, %s153
    %p165 = scmp.eq.s32.totalorder %s28, 1
    %p166 = por %p164, %p165
    %p168 = scmp.ne.s32.totalorder %s153, %s167
    %p169 = scmp.eq.s32.totalorder %s28, 0
    %p170 = por %p168, %p169
    %s172 = sadd.s32 %s171, 1
    %p175 = scmp.eq.s32.totalorder %s22, 1
    %p176 = scmp.ne.s32.totalorder %s171, %s173
    %p177 = scmp.eq.s32.totalorder %s22, 0
    %p178 = por %p176, %p177
    %p179 = scmp.ne.s32.totalorder %s171, %s173
    %p180 = scmp.eq.s32.totalorder %s27, 1
    %p181 = por %p179, %p180
    %p182 = scmp.ne.s32.totalorder %s173, %s174
    %p183 = scmp.eq.s32.totalorder %s27, 0
    %p184 = por %p182, %p183
    %p185 = scmp.ne.s32.totalorder %s173, %s174
    %p186 = scmp.eq.s32.totalorder %s28, 1
    %p187 = por %p185, %p186
    %p189 = scmp.ne.s32.totalorder %s174, %s188
    %p190 = scmp.eq.s32.totalorder %s28, 0
    %p191 = por %p189, %p190
    %s193 = sadd.s32 %s192, 1
    %p196 = scmp.eq.s32.totalorder %s22, 1
    %p197 = scmp.ne.s32.totalorder %s192, %s194
    %p198 = scmp.eq.s32.totalorder %s22, 0
    %p199 = por %p197, %p198
    %p200 = scmp.ne.s32.totalorder %s192, %s194
    %p201 = scmp.eq.s32.totalorder %s27, 1
    %p202 = por %p200, %p201
    %p203 = scmp.ne.s32.totalorder %s194, %s195
    %p204 = scmp.eq.s32.totalorder %s27, 0
    %p205 = por %p203, %p204
    %p206 = scmp.ne.s32.totalorder %s194, %s195
    %p207 = scmp.eq.s32.totalorder %s28, 1
    %p208 = por %p206, %p207
    %p210 = scmp.ne.s32.totalorder %s195, %s209
    %p211 = scmp.eq.s32.totalorder %s28, 0
    %p212 = por %p210, %p211
    %s214 = sadd.s32 %s213, 1
    %p217 = scmp.eq.s32.totalorder %s22, 1
    %p218 = scmp.ne.s32.totalorder %s213, %s215
    %p219 = scmp.eq.s32.totalorder %s22, 0
    %p220 = por %p218, %p219
    %p221 = scmp.ne.s32.totalorder %s213, %s215
    %p222 = scmp.eq.s32.totalorder %s27, 1
    %p223 = por %p221, %p222
    %p224 = scmp.ne.s32.totalorder %s215, %s216
    %p225 = scmp.eq.s32.totalorder %s27, 0
    %p226 = por %p224, %p225
    %p227 = scmp.ne.s32.totalorder %s215, %s216
    %p228 = scmp.eq.s32.totalorder %s28, 1
    %p229 = por %p227, %p228
    %p231 = scmp.ne.s32.totalorder %s216, %s230
    %p232 = scmp.eq.s32.totalorder %s28, 0
    %p233 = por %p231, %p232
    %s235 = sadd.s32 %s234, 1
    %p238 = scmp.eq.s32.totalorder %s22, 1
    %p239 = scmp.ne.s32.totalorder %s234, %s236
    %p240 = scmp.eq.s32.totalorder %s22, 0
    %p241 = por %p239, %p240
    %p242 = scmp.ne.s32.totalorder %s234, %s236
    %p243 = scmp.eq.s32.totalorder %s27, 1
    %p244 = por %p242, %p243
    %p245 = scmp.ne.s32.totalorder %s236, %s237
    %p246 = scmp.eq.s32.totalorder %s27, 0
    %p247 = por %p245, %p246
    %p248 = scmp.ne.s32.totalorder %s236, %s237
    %p249 = scmp.eq.s32.totalorder %s28, 1
    %p250 = por %p248, %p249
    %p252 = scmp.ne.s32.totalorder %s237, %s251
    %p253 = scmp.eq.s32.totalorder %s28, 0
    %p254 = por %p252, %p253
    %s256 = sadd.s32 %s255, 1
    %p259 = scmp.eq.s32.totalorder %s22, 1
    %p260 = scmp.ne.s32.totalorder %s255, %s257
    %p261 = scmp.eq.s32.totalorder %s22, 0
    %p262 = por %p260, %p261
    %p263 = scmp.ne.s32.totalorder %s255, %s257
    %p264 = scmp.eq.s32.totalorder %s27, 1
    %p265 = por %p263, %p264
    %p266 = scmp.ne.s32.totalorder %s257, %s258
    %p267 = scmp.eq.s32.totalorder %s27, 0
    %p268 = por %p266, %p267
    %p269 = scmp.ne.s32.totalorder %s257, %s258
    %p270 = scmp.eq.s32.totalorder %s28, 1
    %p271 = por %p269, %p270
    %p273 = scmp.ne.s32.totalorder %s258, %s272
    %p274 = scmp.eq.s32.totalorder %s28, 0
    %p275 = por %p273, %p274
    %s277 = sadd.s32 %s276, 1
    %p280 = scmp.eq.s32.totalorder %s22, 1
    %p281 = scmp.ne.s32.totalorder %s276, %s278
    %p282 = scmp.eq.s32.totalorder %s22, 0
    %p283 = por %p281, %p282
    %p284 = scmp.ne.s32.totalorder %s276, %s278
    %p285 = scmp.eq.s32.totalorder %s27, 1
    %p286 = por %p284, %p285
    %p287 = scmp.ne.s32.totalorder %s278, %s279
    %p288 = scmp.eq.s32.totalorder %s27, 0
    %p289 = por %p287, %p288
    %p290 = scmp.ne.s32.totalorder %s278, %s279
    %p291 = scmp.eq.s32.totalorder %s28, 1
    %p292 = por %p290, %p291
    %p294 = scmp.ne.s32.totalorder %s279, %s293
    %p295 = scmp.eq.s32.totalorder %s28, 0
    %p296 = por %p294, %p295
    %s298 = sadd.s32 %s297, 1
    %p301 = scmp.eq.s32.totalorder %s22, 1
    %p302 = scmp.ne.s32.totalorder %s297, %s299
    %p303 = scmp.eq.s32.totalorder %s22, 0
    %p304 = por %p302, %p303
    %p305 = scmp.ne.s32.totalorder %s297, %s299
    %p306 = scmp.eq.s32.totalorder %s27, 1
    %p307 = por %p305, %p306
    %p308 = scmp.ne.s32.totalorder %s299, %s300
    %p309 = scmp.eq.s32.totalorder %s27, 0
    %p310 = por %p308, %p309
    %p311 = scmp.ne.s32.totalorder %s299, %s300
    %p312 = scmp.eq.s32.totalorder %s28, 1
    %p313 = por %p311, %p312
    %p315 = scmp.ne.s32.totalorder %s300, %s314
    %p316 = scmp.eq.s32.totalorder %s28, 0
    %p317 = por %p315, %p316
    %s319 = sadd.s32 %s318, 1
    %p322 = scmp.eq.s32.totalorder %s22, 1
    %p323 = scmp.ne.s32.totalorder %s318, %s320
    %p324 = scmp.eq.s32.totalorder %s22, 0
    %p325 = por %p323, %p324
    %p326 = scmp.ne.s32.totalorder %s318, %s320
    %p327 = scmp.eq.s32.totalorder %s27, 1
    %p328 = por %p326, %p327
    %p329 = scmp.ne.s32.totalorder %s320, %s321
    %p330 = scmp.eq.s32.totalorder %s27, 0
    %p331 = por %p329, %p330
    %p332 = scmp.ne.s32.totalorder %s320, %s321
    %p333 = scmp.eq.s32.totalorder %s28, 1
    %p334 = por %p332, %p333
    %p336 = scmp.ne.s32.totalorder %s321, %s335
    %p337 = scmp.eq.s32.totalorder %s28, 0
    %p338 = por %p336, %p337
    %s340 = sadd.s32 %s339, 1
    %p343 = scmp.eq.s32.totalorder %s22, 1
    %p344 = scmp.ne.s32.totalorder %s339, %s341
    %p345 = scmp.eq.s32.totalorder %s22, 0
    %p346 = por %p344, %p345
    %p347 = scmp.ne.s32.totalorder %s339, %s341
    %p348 = scmp.eq.s32.totalorder %s27, 1
    %p349 = por %p347, %p348
    %p350 = scmp.ne.s32.totalorder %s341, %s342
    %p351 = scmp.eq.s32.totalorder %s27, 0
    %p352 = por %p350, %p351
    %p353 = scmp.ne.s32.totalorder %s341, %s342
    %p354 = scmp.eq.s32.totalorder %s28, 1
    %p355 = por %p353, %p354
    %p357 = scmp.ne.s32.totalorder %s342, %s356
    %p358 = scmp.eq.s32.totalorder %s28, 0
    %p359 = por %p357, %p358
    %s361 = sadd.s32 %s360, 1
    %p364 = scmp.eq.s32.totalorder %s22, 1
    %p365 = scmp.ne.s32.totalorder %s360, %s362
    %p366 = scmp.eq.s32.totalorder %s22, 0
    %p367 = por %p365, %p366
    %p368 = scmp.ne.s32.totalorder %s360, %s362
    %p369 = scmp.eq.s32.totalorder %s27, 1
    %p370 = por %p368, %p369
    %p371 = scmp.ne.s32.totalorder %s362, %s363
    %p372 = scmp.eq.s32.totalorder %s27, 0
    %p373 = por %p371, %p372
    %p374 = scmp.ne.s32.totalorder %s362, %s363
    %p375 = scmp.eq.s32.totalorder %s28, 1
    %p376 = por %p374, %p375
    %p378 = scmp.ne.s32.totalorder %s363, %s377
    %p379 = scmp.eq.s32.totalorder %s28, 0
    %p380 = por %p378, %p379
    %s381 = ssub.s32 %s22, %s29
    %p382 = scmp.eq.s32.totalorder %s381, 0
    %s384 = sadd.s32 %s383, 1
    %s385 = scalar_select %p382, %s383, %s384
    %p388 = pneg %p382
    %p389 = scmp.eq.s32.totalorder %s22, 1
    %p390 = por %p388, %p389
    %p391 = scmp.ne.s32.totalorder %s383, %s386
    %p392 = scmp.eq.s32.totalorder %s22, 0
    %p393 = por %p391, %p392
    %p394 = scmp.ne.s32.totalorder %s383, %s386
    %p395 = scmp.eq.s32.totalorder %s27, 1
    %p396 = por %p394, %p395
    %p397 = scmp.ne.s32.totalorder %s386, %s387
    %p398 = scmp.eq.s32.totalorder %s27, 0
    %p399 = por %p397, %p398
    %p400 = scmp.ne.s32.totalorder %s386, %s387
    %p401 = scmp.eq.s32.totalorder %s28, 1
    %p402 = por %p400, %p401
    %p404 = scmp.ne.s32.totalorder %s387, %s403
    %p405 = scmp.eq.s32.totalorder %s28, 0
    %p406 = por %p404, %p405
    %p407 = scmp.le.s32.totalorder 1, %s22
    %p408 = scmp.lt.s32.totalorder %s22, 3
    %p409 = pnand %p407, %p408
    %p410 = pneg %p409
    // Predicated region
    $region9: #{asff_level2_forward.1} parent=5 // pred_check
      _
    $region10: #{asff_level2_forward.1} parent=5 // pred_check_branch
      %412 = sbr.rel (%p409) target = $region12
    $region11: #{asff_level2_forward.1} parent=5 // pred_region
      %s413 = ssub.s32 %s22, 1
      // Predicated region
      $region13: #{asff_level2_forward.1} parent=11 // pred_check
        %p414 = pneg %p121
      $region14: #{asff_level2_forward.1} parent=11 // pred_check_branch
        %416 = sbr.rel (%p414) target = $region16
      $region15: #{asff_level2_forward.1} parent=11 // pred_region
        _
      $region16: #{asff_level2_forward.1} parent=11 // pred_fallthru
        _
      // Predicated region
      $region17: #{asff_level2_forward.1} parent=11 // pred_check
        %p417 = pneg %p142
      $region18: #{asff_level2_forward.1} parent=11 // pred_check_branch
        %419 = sbr.rel (%p417) target = $region20
      $region19: #{asff_level2_forward.1} parent=11 // pred_region
        _
      $region20: #{asff_level2_forward.1} parent=11 // pred_fallthru
        _
      // Predicated region
      $region21: #{asff_level2_forward.1} parent=11 // pred_check
        %p420 = pneg %p163
      $region22: #{asff_level2_forward.1} parent=11 // pred_check_branch
        %422 = sbr.rel (%p420) target = $region24
      $region23: #{asff_level2_forward.1} parent=11 // pred_region
        _
      $region24: #{asff_level2_forward.1} parent=11 // pred_fallthru
        _
      // Predicated region
      $region25: #{asff_level2_forward.1} parent=11 // pred_check
        %p423 = pneg %p184
      $region26: #{asff_level2_forward.1} parent=11 // pred_check_branch
        %425 = sbr.rel (%p423) target = $region28
      $region27: #{asff_level2_forward.1} parent=11 // pred_region
        _
      $region28: #{asff_level2_forward.1} parent=11 // pred_fallthru
        _
      // Predicated region
      $region29: #{asff_level2_forward.1} parent=11 // pred_check
        %p426 = pneg %p205
      $region30: #{asff_level2_forward.1} parent=11 // pred_check_branch
        %428 = sbr.rel (%p426) target = $region32
      $region31: #{asff_level2_forward.1} parent=11 // pred_region
        _
      $region32: #{asff_level2_forward.1} parent=11 // pred_fallthru
        _
      // Predicated region
      $region33: #{asff_level2_forward.1} parent=11 // pred_check
        %p429 = pneg %p226
      $region34: #{asff_level2_forward.1} parent=11 // pred_check_branch
        %431 = sbr.rel (%p429) target = $region36
      $region35: #{asff_level2_forward.1} parent=11 // pred_region
        _
      $region36: #{asff_level2_forward.1} parent=11 // pred_fallthru
        _
      // Predicated region
      $region37: #{asff_level2_forward.1} parent=11 // pred_check
        %p432 = pneg %p247
      $region38: #{asff_level2_forward.1} parent=11 // pred_check_branch
        %434 = sbr.rel (%p432) target = $region40
      $region39: #{asff_level2_forward.1} parent=11 // pred_region
        _
      $region40: #{asff_level2_forward.1} parent=11 // pred_fallthru
        _
      // Predicated region
      $region41: #{asff_level2_forward.1} parent=11 // pred_check
        %p435 = pneg %p268
      $region42: #{asff_level2_forward.1} parent=11 // pred_check_branch
        %437 = sbr.rel (%p435) target = $region44
      $region43: #{asff_level2_forward.1} parent=11 // pred_region
        _
      $region44: #{asff_level2_forward.1} parent=11 // pred_fallthru
        _
      // Predicated region
      $region45: #{asff_level2_forward.1} parent=11 // pred_check
        %p438 = pneg %p289
      $region46: #{asff_level2_forward.1} parent=11 // pred_check_branch
        %440 = sbr.rel (%p438) target = $region48
      $region47: #{asff_level2_forward.1} parent=11 // pred_region
        _
      $region48: #{asff_level2_forward.1} parent=11 // pred_fallthru
        _
      // Predicated region
      $region49: #{asff_level2_forward.1} parent=11 // pred_check
        %p441 = pneg %p310
      $region50: #{asff_level2_forward.1} parent=11 // pred_check_branch
        %443 = sbr.rel (%p441) target = $region52
      $region51: #{asff_level2_forward.1} parent=11 // pred_region
        _
      $region52: #{asff_level2_forward.1} parent=11 // pred_fallthru
        _
      // Predicated region
      $region53: #{asff_level2_forward.1} parent=11 // pred_check
        %p444 = pneg %p331
      $region54: #{asff_level2_forward.1} parent=11 // pred_check_branch
        %446 = sbr.rel (%p444) target = $region56
      $region55: #{asff_level2_forward.1} parent=11 // pred_region
        _
      $region56: #{asff_level2_forward.1} parent=11 // pred_fallthru
        _
      // Predicated region
      $region57: #{asff_level2_forward.1} parent=11 // pred_check
        %p447 = pneg %p352
      $region58: #{asff_level2_forward.1} parent=11 // pred_check_branch
        %449 = sbr.rel (%p447) target = $region60
      $region59: #{asff_level2_forward.1} parent=11 // pred_region
        _
      $region60: #{asff_level2_forward.1} parent=11 // pred_fallthru
        _
      // Predicated region
      $region61: #{asff_level2_forward.1} parent=11 // pred_check
        %p450 = pneg %p373
      $region62: #{asff_level2_forward.1} parent=11 // pred_check_branch
        %452 = sbr.rel (%p450) target = $region64
      $region63: #{asff_level2_forward.1} parent=11 // pred_region
        _
      $region64: #{asff_level2_forward.1} parent=11 // pred_fallthru
        _
    $region12: #{asff_level2_forward.1} parent=5 // pred_fallthru
      _
    %p453 = scmp.lt.s32.totalorder %s22, 2
    // Predicated region
    $region65: #{asff_level2_forward.1} parent=5 // pred_check
      %p454 = pneg %p453
    $region66: #{asff_level2_forward.1} parent=5 // pred_check_branch
      %456 = sbr.rel (%p454) target = $region68
    $region67: #{asff_level2_forward.1} parent=5 // pred_region
      // Predicated region
      $region69: #{asff_level2_forward.1} parent=67 // pred_check
        %p457 = pneg %p42
      $region70: #{asff_level2_forward.1} parent=67 // pred_check_branch
        %459 = sbr.rel (%p457) target = $region72
      $region71: #{asff_level2_forward.1} parent=67 // pred_region
        %p460 = scmp.lt.s32.totalorder %s22, 1
        %s461 = scalar_select %p460, %s22, 1
        %s462 = smul.addr %s461, 2
        %s463 = smul.addr %s462, 8
        %s464 = scalar_lea.vmem %s0, %s463
      $region72: #{asff_level2_forward.1} parent=67 // pred_fallthru
        _
      // Predicated region
      $region73: #{asff_level2_forward.1} parent=67 // pred_check
        %p465 = pneg %p68
      $region74: #{asff_level2_forward.1} parent=67 // pred_check_branch
        %467 = sbr.rel (%p465) target = $region76
      $region75: #{asff_level2_forward.1} parent=67 // pred_region
        %p468 = scmp.lt.s32.totalorder %s22, 1
        %s469 = scalar_select %p468, %s22, 1
        %s470 = smul.addr %s469, 8
        %s471 = scalar_lea.vmem %s1, %s470
      $region76: #{asff_level2_forward.1} parent=67 // pred_fallthru
        _
      // Predicated region
      $region77: #{asff_level2_forward.1} parent=67 // pred_check
        %p472 = pneg %p94
      $region78: #{asff_level2_forward.1} parent=67 // pred_check_branch
        %474 = sbr.rel (%p472) target = $region80
      $region79: #{asff_level2_forward.1} parent=67 // pred_region
        %p475 = scmp.lt.s32.totalorder %s22, 1
        %s476 = scalar_select %p475, %s22, 1
        %s477 = smul.addr %s476, 2
        %s478 = smul.addr %s477, 8
        %s479 = scalar_lea.vmem %s2, %s478
      $region80: #{asff_level2_forward.1} parent=67 // pred_fallthru
        _
    $region68: #{asff_level2_forward.1} parent=5 // pred_fallthru
      _
    %p480 = scmp.le.s32.totalorder 1, %s22
    %p481 = scmp.lt.s32.totalorder %s22, 3
    %p482 = pnand %p480, %p481
    %p483 = pneg %p482
    // Predicated region
    $region81: #{asff_level2_forward.1} parent=5 // pred_check
      _
    $region82: #{asff_level2_forward.1} parent=5 // pred_check_branch
      %485 = sbr.rel (%p482) target = $region84
    $region83: #{asff_level2_forward.1} parent=5 // pred_region
      %s486 = ssub.s32 %s22, 1
      %p487 = scmp.lt.s32.totalorder %s27, 1
      %s488 = scalar_select %p487, %s27, 1
      %s489 = smul.addr %s488, 2
      %s490 = smul.addr %s489, 8
      %s491 = scalar_lea.vmem %s0, %s490
      %p492 = pneg %p48
      %p493 = pneg %p45
      %p494 = scmp.lt.s32.totalorder %s27, 1
      %s495 = scalar_select %p494, %s27, 1
      %s496 = smul.addr %s495, 8
      %s497 = scalar_lea.vmem %s1, %s496
      %p498 = pneg %p74
      %p499 = pneg %p71
      %p500 = scmp.lt.s32.totalorder %s27, 1
      %s501 = scalar_select %p500, %s27, 1
      %s502 = smul.addr %s501, 2
      %s503 = smul.addr %s502, 8
      %s504 = scalar_lea.vmem %s2, %s503
      %p505 = pneg %p100
      %p506 = pneg %p97
      %p507 = pneg %p121
      %p508 = pneg %p118
      %p509 = pneg %p142
      %p510 = pneg %p139
      %p511 = pneg %p163
      %p512 = pneg %p160
      %p513 = pneg %p184
      %p514 = pneg %p181
      %p515 = pneg %p205
      %p516 = pneg %p202
      %p517 = pneg %p226
      %p518 = pneg %p223
      %p519 = pneg %p247
      %p520 = pneg %p244
      %p521 = pneg %p268
      %p522 = pneg %p265
      %p523 = pneg %p289
      %p524 = pneg %p286
      %p525 = pneg %p310
      %p526 = pneg %p307
      %p527 = pneg %p331
      %p528 = pneg %p328
      %p529 = pneg %p352
      %p530 = pneg %p349
      %p531 = pneg %p373
      %p532 = pneg %p370
      %p533 = pneg %p399
      %p534 = pneg %p396
      %p535 = scmp.lt.s32.totalorder %s27, 1
      %s536 = scalar_select %p535, %s27, 1
      %s537 = smul.addr %s536, 2
      %s538 = smul.addr %s537, 8
      %s539 = scalar_lea.vmem %s16, %s538
      %p540 = scmp.lt.s32.totalorder %s27, 1
      %s541 = scalar_select %p540, %s27, 1
      %s542 = smul.addr %s541, 2
      %s543 = smul.addr %s542, 8
      %s544 = scalar_lea.vmem %s0, %s543
      %p545 = scmp.lt.s32.totalorder %s27, 1
      %s546 = scalar_select %p545, %s27, 1
      %s547 = smul.addr %s546, 8
      %s548 = scalar_lea.vmem %s1, %s547
      %p549 = scmp.lt.s32.totalorder %s27, 1
      %s550 = scalar_select %p549, %s27, 1
      %s551 = smul.addr %s550, 2
      %s552 = smul.addr %s551, 8
      %s553 = scalar_lea.vmem %s2, %s552
      %p554 = scmp.lt.s32.totalorder %s27, 1
      %s555 = scalar_select %p554, %s27, 1
      %s556 = smul.addr %s555, 2
      %s557 = smul.addr %s556, 8
      %s558 = scalar_lea.vmem %s16, %s557
      %v559 = vld [vmem:[%s6] sm:$0xff]
      %v560 = vld [vmem:[%s544] sm:$0xff]
      %v561 = vld [vmem:[%s544 + $0x8] sm:$0xff]
      %v562 = vld [vmem:[%s7] sm:$0xff]
      %564 = vset.pattern.permute.xlu0 0
      %565 = vperm.xlu0 %564, %v562
      %v566 = vpop.permute.xlu0 %565
      %vm568 = vcmask 130048
      %v570 = vsel %vm568, %v559, 0
      %572 = vmatpush.msra.mxu0 0.0
      %573 = vmatpush.msra.mxu0 0.0
      %574 = vmatpush.msra.mxu0 0.0
      %575 = vmatpush.msra.mxu0 0.0
      %576 = vmatpush.msra.mxu0 0.0
      %577 = vmatpush.msra.mxu0 0.0
      %578 = vmatpush.msra.mxu0 0.0
      %579 = vmatpush.msra.mxu0 0.0
      %580 = vmatpush.msra.mxu0 0.0
      %581 = vmatpush.msra.mxu0 0.0
      %582 = vmatpush.msra.mxu0 0.0
      %583 = vmatpush.msra.mxu0 0.0
      %584 = vmatpush.msra.mxu0 0.0
      %585 = vmatpush.msra.mxu0 0.0
      %586 = vmatpush.msra.mxu0 %v561
      %587 = vmatpush.msra.mxu0 %v560
      %588 = vmatmul.f32.gmra.mxu0 %v570
      %v589 = vpop.f32.mrf.mxu0
      %v590 = vadd.f32 %v566, %v589
      %591 = vdwg.mxu0
      %v592 = vmax.f32 %v590, 0.0
      %v593 = vmin.f32 %v592, 6.0
      %v594 = vld [vmem:[%s3] sm:$0xff]
      %v595 = vld [vmem:[%s3 + $0x8] sm:$0xff]
      %v596 = vld [vmem:[%s3 + $0x10] sm:$0xff]
      %v597 = vld [vmem:[%s3 + $0x18] sm:$0xff]
      %v599 = vsel %vm568, %v593, 0
      %601 = vmatpush.msra.mxu0 0.0
      %602 = vmatpush.msra.mxu0 0.0
      %603 = vmatpush.msra.mxu0 0.0
      %604 = vmatpush.msra.mxu0 0.0
      %605 = vmatpush.msra.mxu0 0.0
      %606 = vmatpush.msra.mxu0 0.0
      %607 = vmatpush.msra.mxu0 0.0
      %608 = vmatpush.msra.mxu0 0.0
      %609 = vmatpush.msra.mxu0 0.0
      %610 = vmatpush.msra.mxu0 0.0
      %611 = vmatpush.msra.mxu0 0.0
      %612 = vmatpush.msra.mxu0 0.0
      %613 = vmatpush.msra.mxu0 0.0
      %614 = vmatpush.msra.mxu0 0.0
      %615 = vmatpush.msra.mxu0 %v596
      %616 = vmatpush.msra.mxu0 %v594
      %617 = vmatmul.f32.gmra.mxu0 %v599
      %v618 = vpop.f32.mrf.mxu0
      %v619 = vadd.f32 0.0, %v618
      %620 = vdwg.mxu0
      %621 = vmatpush.msra.mxu0 0.0
      %622 = vmatpush.msra.mxu0 0.0
      %623 = vmatpush.msra.mxu0 0.0
      %624 = vmatpush.msra.mxu0 0.0
      %625 = vmatpush.msra.mxu0 0.0
      %626 = vmatpush.msra.mxu0 0.0
      %627 = vmatpush.msra.mxu0 0.0
      %628 = vmatpush.msra.mxu0 0.0
      %629 = vmatpush.msra.mxu0 0.0
      %630 = vmatpush.msra.mxu0 0.0
      %631 = vmatpush.msra.mxu0 0.0
      %632 = vmatpush.msra.mxu0 0.0
      %633 = vmatpush.msra.mxu0 0.0
      %634 = vmatpush.msra.mxu0 0.0
      %635 = vmatpush.msra.mxu0 %v597
      %636 = vmatpush.msra.mxu0 %v595
      %637 = vmatmul.f32.gmra.mxu0 %v599
      %v638 = vpop.f32.mrf.mxu0
      %v639 = vadd.f32 0.0, %v638
      %640 = vdwg.mxu0
      %v641 = vld [vmem:[%s8] sm:$0xff]
      %v642 = vld [vmem:[%s548] sm:$0xff]
      %v643 = vld [vmem:[%s9] sm:$0xff]
      %645 = vset.pattern.permute.xlu0 0
      %646 = vperm.xlu0 %645, %v643
      %v647 = vpop.permute.xlu0 %646
      %vm649 = vcmask 64512
      %v651 = vsel %vm649, %v641, 0
      %653 = vmatpush.msra.mxu0 0.0
      %654 = vmatpush.msra.mxu0 0.0
      %655 = vmatpush.msra.mxu0 0.0
      %656 = vmatpush.msra.mxu0 0.0
      %657 = vmatpush.msra.mxu0 0.0
      %658 = vmatpush.msra.mxu0 0.0
      %659 = vmatpush.msra.mxu0 0.0
      %660 = vmatpush.msra.mxu0 0.0
      %661 = vmatpush.msra.mxu0 0.0
      %662 = vmatpush.msra.mxu0 0.0
      %663 = vmatpush.msra.mxu0 0.0
      %664 = vmatpush.msra.mxu0 0.0
      %665 = vmatpush.msra.mxu0 0.0
      %666 = vmatpush.msra.mxu0 0.0
      %667 = vmatpush.msra.mxu0 0.0
      %668 = vmatpush.msra.mxu0 %v642
      %669 = vmatmul.f32.gmra.mxu0 %v651
      %v670 = vpop.f32.mrf.mxu0
      %v671 = vadd.f32 %v647, %v670
      %672 = vdwg.mxu0
      %v673 = vmax.f32 %v671, 0.0
      %v674 = vmin.f32 %v673, 6.0
      %v675 = vld [vmem:[%s4] sm:$0xff]
      %v676 = vld [vmem:[%s4 + $0x8] sm:$0xff]
      %v677 = vld [vmem:[%s4 + $0x10] sm:$0xff]
      %v678 = vld [vmem:[%s4 + $0x18] sm:$0xff]
      %v679 = vld [vmem:[%s4 + $0x20] sm:$0xff]
      %v680 = vld [vmem:[%s4 + $0x28] sm:$0xff]
      %v681 = vld [vmem:[%s4 + $0x30] sm:$0xff]
      %v682 = vld [vmem:[%s4 + $0x38] sm:$0xff]
      %v683 = vld [vmem:[%s4 + $0x40] sm:$0xff]
      %v684 = vld [vmem:[%s4 + $0x48] sm:$0xff]
      %v685 = vld [vmem:[%s4 + $0x50] sm:$0xff]
      %v686 = vld [vmem:[%s4 + $0x58] sm:$0xff]
      %v687 = vld [vmem:[%s4 + $0x60] sm:$0xff]
      %v688 = vld [vmem:[%s4 + $0x68] sm:$0xff]
      %v689 = vld [vmem:[%s4 + $0x70] sm:$0xff]
      %v690 = vld [vmem:[%s4 + $0x78] sm:$0xff]
      %vm691 = vcmask 523264
      %v693 = vsel %vm691, %v674, 0
      %695 = vmatpush.msra.mxu0 0.0
      %696 = vmatpush.msra.mxu0 0.0
      %697 = vmatpush.msra.mxu0 0.0
      %698 = vmatpush.msra.mxu0 0.0
      %699 = vmatpush.msra.mxu0 0.0
      %700 = vmatpush.msra.mxu0 0.0
      %701 = vmatpush.msra.mxu0 0.0
      %702 = vmatpush.msra.mxu0 0.0
      %703 = vmatpush.msra.mxu0 %v689
      %704 = vmatpush.msra.mxu0 %v687
      %705 = vmatpush.msra.mxu0 %v685
      %706 = vmatpush.msra.mxu0 %v683
      %707 = vmatpush.msra.mxu0 %v681
      %708 = vmatpush.msra.mxu0 %v679
      %709 = vmatpush.msra.mxu0 %v677
      %710 = vmatpush.msra.mxu0 %v675
      %711 = vmatmul.f32.gmra.mxu0 %v693
      %v712 = vpop.f32.mrf.mxu0
      %v713 = vadd.f32 0.0, %v712
      %714 = vdwg.mxu0
      %715 = vmatpush.msra.mxu0 0.0
      %716 = vmatpush.msra.mxu0 0.0
      %717 = vmatpush.msra.mxu0 0.0
      %718 = vmatpush.msra.mxu0 0.0
      %719 = vmatpush.msra.mxu0 0.0
      %720 = vmatpush.msra.mxu0 0.0
      %721 = vmatpush.msra.mxu0 0.0
      %722 = vmatpush.msra.mxu0 0.0
      %723 = vmatpush.msra.mxu0 %v690
      %724 = vmatpush.msra.mxu0 %v688
      %725 = vmatpush.msra.mxu0 %v686
      %726 = vmatpush.msra.mxu0 %v684
      %727 = vmatpush.msra.mxu0 %v682
      %728 = vmatpush.msra.mxu0 %v680
      %729 = vmatpush.msra.mxu0 %v678
      %730 = vmatpush.msra.mxu0 %v676
      %731 = vmatmul.f32.gmra.mxu0 %v693
      %v732 = vpop.f32.mrf.mxu0
      %v733 = vadd.f32 0.0, %v732
      %734 = vdwg.mxu0
      %v735 = vld [vmem:[%s553] sm:$0xff]
      %v736 = vld [vmem:[%s553 + $0x8] sm:$0xff]
      %v737 = vld [vmem:[%s10] sm:$0xff]
      %v738 = vld [vmem:[%s10 + $0x8] sm:$0xff]
      %v739 = vld [vmem:[%s10 + $0x10] sm:$0xff]
      %v740 = vld [vmem:[%s10 + $0x18] sm:$0xff]
      %v741 = vld [vmem:[%s10 + $0x20] sm:$0xff]
      %v742 = vld [vmem:[%s10 + $0x28] sm:$0xff]
      %v743 = vld [vmem:[%s11] sm:$0xff]
      %v744 = vld [vmem:[%s11 + $0x8] sm:$0xff]
      %v745 = vld [vmem:[%s11 + $0x10] sm:$0xff]
      %v746 = vld [vmem:[%s11 + $0x18] sm:$0xff]
      %v747 = vld [vmem:[%s11 + $0x20] sm:$0xff]
      %v748 = vld [vmem:[%s11 + $0x28] sm:$0xff]
      %750 = vset.pattern.permute.xlu0 0
      %751 = vperm.xlu0 %750, %v743
      %v752 = vpop.permute.xlu0 %751
      %755 = vset.pattern.permute.xlu0 0
      %756 = vperm.xlu0 %755, %v744
      %v757 = vpop.permute.xlu0 %756
      %760 = vset.pattern.permute.xlu0 0
      %761 = vperm.xlu0 %760, %v745
      %v762 = vpop.permute.xlu0 %761
      %765 = vset.pattern.permute.xlu0 0
      %766 = vperm.xlu0 %765, %v746
      %v767 = vpop.permute.xlu0 %766
      %770 = vset.pattern.permute.xlu0 0
      %771 = vperm.xlu0 %770, %v747
      %v772 = vpop.permute.xlu0 %771
      %775 = vset.pattern.permute.xlu0 0
      %776 = vperm.xlu0 %775, %v748
      %v777 = vpop.permute.xlu0 %776
      %vm779 = vcmask 195584
      %v781 = vsel %vm779, %v737, 0
      %v784 = vsel %vm779, %v738, 0
      %v787 = vsel %vm779, %v739, 0
      %v790 = vsel %vm779, %v740, 0
      %v793 = vsel %vm779, %v741, 0
      %v796 = vsel %vm779, %v742, 0
      %798 = vmatpush.msra.mxu0 0.0
      %799 = vmatpush.msra.mxu0 0.0
      %800 = vmatpush.msra.mxu0 0.0
      %801 = vmatpush.msra.mxu0 0.0
      %802 = vmatpush.msra.mxu0 0.0
      %803 = vmatpush.msra.mxu0 0.0
      %804 = vmatpush.msra.mxu0 0.0
      %805 = vmatpush.msra.mxu0 0.0
      %806 = vmatpush.msra.mxu0 0.0
      %807 = vmatpush.msra.mxu0 0.0
      %808 = vmatpush.msra.mxu0 0.0
      %809 = vmatpush.msra.mxu0 0.0
      %810 = vmatpush.msra.mxu0 0.0
      %811 = vmatpush.msra.mxu0 %v735
      %812 = vmatpush.msra.mxu0 %v713
      %813 = vmatpush.msra.mxu0 %v619
      %814 = vmatmul.f32.gmra.mxu0 %v781
      %v815 = vpop.f32.mrf.mxu0
      %v816 = vadd.f32 %v752, %v815
      %817 = vmatmul.f32.gmra.mxu0 %v784
      %v818 = vpop.f32.mrf.mxu0
      %v819 = vadd.f32 %v757, %v818
      %820 = vmatmul.f32.gmra.mxu0 %v787
      %v821 = vpop.f32.mrf.mxu0
      %v822 = vadd.f32 %v762, %v821
      %823 = vmatmul.f32.gmra.mxu0 %v790
      %v824 = vpop.f32.mrf.mxu0
      %v825 = vadd.f32 %v767, %v824
      %826 = vmatmul.f32.gmra.mxu0 %v793
      %v827 = vpop.f32.mrf.mxu0
      %v828 = vadd.f32 %v772, %v827
      %829 = vmatmul.f32.gmra.mxu0 %v796
      %v830 = vpop.f32.mrf.mxu0
      %v831 = vadd.f32 %v777, %v830
      %832 = vdwg.mxu0
      %833 = vmatpush.msra.mxu0 0.0
      %834 = vmatpush.msra.mxu0 0.0
      %835 = vmatpush.msra.mxu0 0.0
      %836 = vmatpush.msra.mxu0 0.0
      %837 = vmatpush.msra.mxu0 0.0
      %838 = vmatpush.msra.mxu0 0.0
      %839 = vmatpush.msra.mxu0 0.0
      %840 = vmatpush.msra.mxu0 0.0
      %841 = vmatpush.msra.mxu0 0.0
      %842 = vmatpush.msra.mxu0 0.0
      %843 = vmatpush.msra.mxu0 0.0
      %844 = vmatpush.msra.mxu0 0.0
      %845 = vmatpush.msra.mxu0 0.0
      %846 = vmatpush.msra.mxu0 %v736
      %847 = vmatpush.msra.mxu0 %v733
      %848 = vmatpush.msra.mxu0 %v639
      %849 = vmatmul.f32.gmra.mxu0 %v781
      %v850 = vpop.f32.mrf.mxu0
      %v851 = vadd.f32 %v752, %v850
      %852 = vmatmul.f32.gmra.mxu0 %v784
      %v853 = vpop.f32.mrf.mxu0
      %v854 = vadd.f32 %v757, %v853
      %855 = vmatmul.f32.gmra.mxu0 %v787
      %v856 = vpop.f32.mrf.mxu0
      %v857 = vadd.f32 %v762, %v856
      %858 = vmatmul.f32.gmra.mxu0 %v790
      %v859 = vpop.f32.mrf.mxu0
      %v860 = vadd.f32 %v767, %v859
      %861 = vmatmul.f32.gmra.mxu0 %v793
      %v862 = vpop.f32.mrf.mxu0
      %v863 = vadd.f32 %v772, %v862
      %864 = vmatmul.f32.gmra.mxu0 %v796
      %v865 = vpop.f32.mrf.mxu0
      %v866 = vadd.f32 %v777, %v865
      %867 = vdwg.mxu0
      %v868 = vmax.f32 %v816, 0.0
      %v869 = vmax.f32 %v851, 0.0
      %v870 = vmax.f32 %v819, 0.0
      %v871 = vmax.f32 %v854, 0.0
      %v872 = vmax.f32 %v822, 0.0
      %v873 = vmax.f32 %v857, 0.0
      %v874 = vmax.f32 %v825, 0.0
      %v875 = vmax.f32 %v860, 0.0
      %v876 = vmax.f32 %v828, 0.0
      %v877 = vmax.f32 %v863, 0.0
      %v878 = vmax.f32 %v831, 0.0
      %v879 = vmax.f32 %v866, 0.0
      %v880 = vmin.f32 %v868, 6.0
      %v881 = vmin.f32 %v869, 6.0
      %v882 = vmin.f32 %v870, 6.0
      %v883 = vmin.f32 %v871, 6.0
      %v884 = vmin.f32 %v872, 6.0
      %v885 = vmin.f32 %v873, 6.0
      %v886 = vmin.f32 %v874, 6.0
      %v887 = vmin.f32 %v875, 6.0
      %v888 = vmin.f32 %v876, 6.0
      %v889 = vmin.f32 %v877, 6.0
      %v890 = vmin.f32 %v878, 6.0
      %v891 = vmin.f32 %v879, 6.0
      %v892 = vld [vmem:[%s12] sm:$0xff]
      %v893 = vld [vmem:[%s13] sm:$0xff]
      %895 = vset.pattern.permute.xlu0 0
      %896 = vperm.xlu0 %895, %v893
      %v897 = vpop.permute.xlu0 %896
      %vm899 = vcmask 392192
      %v901 = vsel %vm899, %v892, 0
      %903 = vmatpush.msra.mxu0 0.0
      %904 = vmatpush.msra.mxu0 0.0
      %905 = vmatpush.msra.mxu0 0.0
      %906 = vmatpush.msra.mxu0 0.0
      %907 = vmatpush.msra.mxu0 0.0
      %908 = vmatpush.msra.mxu0 0.0
      %909 = vmatpush.msra.mxu0 0.0
      %910 = vmatpush.msra.mxu0 0.0
      %911 = vmatpush.msra.mxu0 0.0
      %912 = vmatpush.msra.mxu0 0.0
      %913 = vmatpush.msra.mxu0 %v890
      %914 = vmatpush.msra.mxu0 %v888
      %915 = vmatpush.msra.mxu0 %v886
      %916 = vmatpush.msra.mxu0 %v884
      %917 = vmatpush.msra.mxu0 %v882
      %918 = vmatpush.msra.mxu0 %v880
      %919 = vmatmul.f32.gmra.mxu0 %v901
      %v920 = vpop.f32.mrf.mxu0
      %v921 = vadd.f32 %v897, %v920
      %922 = vdwg.mxu0
      %923 = vmatpush.msra.mxu0 0.0
      %924 = vmatpush.msra.mxu0 0.0
      %925 = vmatpush.msra.mxu0 0.0
      %926 = vmatpush.msra.mxu0 0.0
      %927 = vmatpush.msra.mxu0 0.0
      %928 = vmatpush.msra.mxu0 0.0
      %929 = vmatpush.msra.mxu0 0.0
      %930 = vmatpush.msra.mxu0 0.0
      %931 = vmatpush.msra.mxu0 0.0
      %932 = vmatpush.msra.mxu0 0.0
      %933 = vmatpush.msra.mxu0 %v891
      %934 = vmatpush.msra.mxu0 %v889
      %935 = vmatpush.msra.mxu0 %v887
      %936 = vmatpush.msra.mxu0 %v885
      %937 = vmatpush.msra.mxu0 %v883
      %938 = vmatpush.msra.mxu0 %v881
      %939 = vmatmul.f32.gmra.mxu0 %v901
      %v940 = vpop.f32.mrf.mxu0
      %v941 = vadd.f32 %v897, %v940
      %942 = vdwg.mxu0
      %v945 = vrot.slane %v921, 1
      %v946 = vrot.slane %v941, 1
      %v949 = vmax.f32 %v921, %v945
      %v950 = vmax.f32 %v941, %v946
      %v951 = vrot.slane %v921, 2
      %v952 = vrot.slane %v941, 2
      %v955 = vmax.f32 %v949, %v951
      %v956 = vmax.f32 %v950, %v952
      %v957 = vsub.f32 %v921, %v955
      %v958 = vsub.f32 %v941, %v956
      %v959 = vmul.f32 %v957, 1.442695
      %v960 = vpow.pop %v959
      %v961 = vmul.f32 %v958, 1.442695
      %v962 = vpow.pop %v961
      %v965 = vrot.slane %v955, 7
      %v966 = vrot.slane %v956, 7
      %v969 = vsub.f32 %v921, %v965
      %v970 = vsub.f32 %v941, %v966
      %v971 = vmul.f32 %v969, 1.442695
      %v972 = vpow.pop %v971
      %v973 = vmul.f32 %v970, 1.442695
      %v974 = vpow.pop %v973
      %v975 = vrot.slane %v955, 6
      %v976 = vrot.slane %v956, 6
      %v979 = vsub.f32 %v921, %v975
      %v980 = vsub.f32 %v941, %v976
      %v981 = vmul.f32 %v979, 1.442695
      %v982 = vpow.pop %v981
      %v983 = vmul.f32 %v980, 1.442695
      %v984 = vpow.pop %v983
      %v987 = vrot.slane %v972, 1
      %v988 = vrot.slane %v974, 1
      %v991 = vadd.f32 %v960, %v987
      %v992 = vadd.f32 %v962, %v988
      %v995 = vrot.slane %v982, 2
      %v996 = vrot.slane %v984, 2
      %v999 = vadd.f32 %v991, %v995
      %v1000 = vadd.f32 %v992, %v996
      %v1001 = vrcp.pop %v999
      %v1002 = vmul.f32 %v999, %v1001
      %v1003 = vsub.f32 1.0, %v1002
      %v1004 = vmul.f32 %v1001, %v1003
      %v1005 = vadd.f32 %v1001, %v1004
      %vm1006 = vweird.f32 %v999
      %vm1007 = vweird.f32 %v1001
      %vm1008 = vmor %vm1006, %vm1007
      %v1009 = vsel %vm1008, %v1001, %v1005
      %v1010 = vand.u32 2147483647, %v999
      %vm1011 = vcmp.eq.f32.partialorder %v1010, 8.507059e+37
      %v1012 = vand.u32 %v999, 2147483648
      %v1013 = vor.u32 1.1754944e-38, %v1012
      %v1014 = vsel %vm1011, %v1013, %v1009
      %v1015 = vmul.f32 1.0, %v1014
      %v1016 = vrcp.pop %v1000
      %v1017 = vmul.f32 %v1000, %v1016
      %v1018 = vsub.f32 1.0, %v1017
      %v1019 = vmul.f32 %v1016, %v1018
      %v1020 = vadd.f32 %v1016, %v1019
      %vm1021 = vweird.f32 %v1000
      %vm1022 = vweird.f32 %v1016
      %vm1023 = vmor %vm1021, %vm1022
      %v1024 = vsel %vm1023, %v1016, %v1020
      %v1025 = vand.u32 2147483647, %v1000
      %vm1026 = vcmp.eq.f32.partialorder %v1025, 8.507059e+37
      %v1027 = vand.u32 %v1000, 2147483648
      %v1028 = vor.u32 1.1754944e-38, %v1027
      %v1029 = vsel %vm1026, %v1028, %v1024
      %v1030 = vmul.f32 1.0, %v1029
      %v1031 = vmul.f32 %v960, %v1015
      %v1032 = vmul.f32 %v962, %v1030
      %v1033 = vperm.slane %v1031, 0
      %v1034 = vperm.slane %v1032, 0
      %v1035 = vmul.f32 %v619, %v1033
      %v1036 = vmul.f32 %v639, %v1034
      %v1039 = vrot.slane %v1015, 7
      %v1040 = vrot.slane %v1030, 7
      %v1043 = vmul.f32 %v972, %v1039
      %v1044 = vmul.f32 %v974, %v1040
      %v1045 = vperm.slane %v1043, 1
      %v1046 = vperm.slane %v1044, 1
      %v1047 = vmul.f32 %v713, %v1045
      %v1048 = vmul.f32 %v733, %v1046
      %v1049 = vadd.f32 %v1035, %v1047
      %v1050 = vadd.f32 %v1036, %v1048
      %v1051 = vrot.slane %v1015, 6
      %v1052 = vrot.slane %v1030, 6
      %v1055 = vmul.f32 %v982, %v1051
      %v1056 = vmul.f32 %v984, %v1052
      %v1057 = vperm.slane %v1055, 2
      %v1058 = vperm.slane %v1056, 2
      %v1059 = vmul.f32 %v735, %v1057
      %v1060 = vmul.f32 %v736, %v1058
      %v1061 = vadd.f32 %v1049, %v1059
      %v1062 = vadd.f32 %v1050, %v1060
      %v1063 = vld [vmem:[%s5] sm:$0xff]
      %v1064 = vld [vmem:[%s5 + $0x8] sm:$0xff]
      %1065 = vrot.lane.b32.xlu0 %v1061, 17
      %v1066 = vpop.permute.xlu0 %1065
      %1067 = vrot.lane.b32.xlu0 %v1062, 17
      %v1068 = vpop.permute.xlu0 %1067
      %v1069 = vlaneseq
      %v1070 = vand.u32 %v1069, 127
      %vm1071 = vcmp.lt.s32.totalorder %v1070, 17
      %v1072 = vsel %vm1071, %v1066, %v1068
      %v1073 = vsel %vm1071, %v1068, %v1066
      %v1074 = vperm.slane %v1063, 0
      %v1075 = vperm.slane %v1064, 0
      %v1076 = vmul.f32 %v1073, %v1074
      %v1077 = vmul.f32 %v1072, %v1075
      %1078 = vrot.lane.b32.xlu0 %v1061, 16
      %v1079 = vpop.permute.xlu0 %1078
      %1080 = vrot.lane.b32.xlu0 %v1062, 16
      %v1081 = vpop.permute.xlu0 %1080
      %vm1082 = vcmp.lt.s32.totalorder %v1070, 16
      %v1083 = vsel %vm1082, %v1079, %v1081
      %v1084 = vsel %vm1082, %v1081, %v1079
      %v1085 = vperm.slane %v1063, 1
      %v1086 = vperm.slane %v1064, 1
      %v1087 = vmul.f32 %v1084, %v1085
      %v1088 = vmul.f32 %v1083, %v1086
      %1089 = vrot.lane.b32.xlu0 %v1061, 15
      %v1090 = vpop.permute.xlu0 %1089
      %1091 = vrot.lane.b32.xlu0 %v1062, 15
      %v1092 = vpop.permute.xlu0 %1091
      %vm1093 = vcmp.lt.s32.totalorder %v1070, 15
      %v1094 = vsel %vm1093, %v1090, %v1092
      %v1095 = vsel %vm1093, %v1092, %v1090
      %v1096 = vperm.slane %v1063, 2
      %v1097 = vperm.slane %v1064, 2
      %v1098 = vmul.f32 %v1095, %v1096
      %v1099 = vmul.f32 %v1094, %v1097
      %1100 = vrot.lane.b32.xlu0 %v1061, 1
      %v1101 = vpop.permute.xlu0 %1100
      %1102 = vrot.lane.b32.xlu0 %v1062, 1
      %v1103 = vpop.permute.xlu0 %1102
      %vm1104 = vcmp.lt.s32.totalorder %v1070, 1
      %v1105 = vsel %vm1104, %v1101, %v1103
      %v1106 = vsel %vm1104, %v1103, %v1101
      %v1107 = vperm.slane %v1063, 3
      %v1108 = vperm.slane %v1064, 3
      %v1109 = vmul.f32 %v1106, %v1107
      %v1110 = vmul.f32 %v1105, %v1108
      %1111 = vrot.lane.b32.xlu0 %v1061, 127
      %v1112 = vpop.permute.xlu0 %1111
      %1113 = vrot.lane.b32.xlu0 %v1062, 127
      %v1114 = vpop.permute.xlu0 %1113
      %vm1115 = vcmp.lt.s32.totalorder %v1070, 127
      %v1116 = vsel %vm1115, %v1112, %v1114
      %v1117 = vsel %vm1115, %v1114, %v1112
      %v1118 = vperm.slane %v1063, 4
      %v1119 = vperm.slane %v1064, 4
      %v1120 = vmul.f32 %v1116, %v1118
      %v1121 = vmul.f32 %v1117, %v1119
      %1122 = vrot.lane.b32.xlu0 %v1061, 113
      %v1123 = vpop.permute.xlu0 %1122
      %1124 = vrot.lane.b32.xlu0 %v1062, 113
      %v1125 = vpop.permute.xlu0 %1124
      %vm1126 = vcmp.lt.s32.totalorder %v1070, 113
      %v1127 = vsel %vm1126, %v1123, %v1125
      %v1128 = vsel %vm1126, %v1125, %v1123
      %v1129 = vperm.slane %v1063, 5
      %v1130 = vperm.slane %v1064, 5
      %v1131 = vmul.f32 %v1127, %v1129
      %v1132 = vmul.f32 %v1128, %v1130
      %1133 = vrot.lane.b32.xlu0 %v1061, 112
      %v1134 = vpop.permute.xlu0 %1133
      %1135 = vrot.lane.b32.xlu0 %v1062, 112
      %v1136 = vpop.permute.xlu0 %1135
      %vm1137 = vcmp.lt.s32.totalorder %v1070, 112
      %v1138 = vsel %vm1137, %v1134, %v1136
      %v1139 = vsel %vm1137, %v1136, %v1134
      %v1140 = vperm.slane %v1063, 6
      %v1141 = vperm.slane %v1064, 6
      %v1142 = vmul.f32 %v1138, %v1140
      %v1143 = vmul.f32 %v1139, %v1141
      %1144 = vrot.lane.b32.xlu0 %v1061, 111
      %v1145 = vpop.permute.xlu0 %1144
      %1146 = vrot.lane.b32.xlu0 %v1062, 111
      %v1147 = vpop.permute.xlu0 %1146
      %vm1148 = vcmp.lt.s32.totalorder %v1070, 111
      %v1149 = vsel %vm1148, %v1145, %v1147
      %v1150 = vsel %vm1148, %v1147, %v1145
      %v1151 = vperm.slane %v1063, 7
      %v1152 = vperm.slane %v1064, 7
      %v1153 = vmul.f32 %v1149, %v1151
      %v1154 = vmul.f32 %v1150, %v1152
      %v1155 = vld [vmem:[%s14] sm:$0xff]
      %v1156 = vld [vmem:[%s15] sm:$0xff]
      %1158 = vset.pattern.permute.xlu0 0
      %1159 = vperm.xlu0 %1158, %v1156
      %v1160 = vpop.permute.xlu0 %1159
      %vm1162 = vcmask 588800
      %v1164 = vsel %vm1162, %v1155, 0
      %1166 = vmatpush.msra.mxu0 0.0
      %1167 = vmatpush.msra.mxu0 0.0
      %1168 = vmatpush.msra.mxu0 0.0
      %1169 = vmatpush.msra.mxu0 0.0
      %1170 = vmatpush.msra.mxu0 0.0
      %1171 = vmatpush.msra.mxu0 0.0
      %1172 = vmatpush.msra.mxu0 0.0
      %1173 = vmatpush.msra.mxu0 %v1153
      %1174 = vmatpush.msra.mxu0 %v1142
      %1175 = vmatpush.msra.mxu0 %v1131
      %1176 = vmatpush.msra.mxu0 %v1120
      %1177 = vmatpush.msra.mxu0 %v1061
      %1178 = vmatpush.msra.mxu0 %v1109
      %1179 = vmatpush.msra.mxu0 %v1098
      %1180 = vmatpush.msra.mxu0 %v1087
      %1181 = vmatpush.msra.mxu0 %v1076
      %1182 = vmatmul.f32.gmra.mxu0 %v1164
      %v1183 = vpop.f32.mrf.mxu0
      %v1184 = vadd.f32 %v1160, %v1183
      %1185 = vdwg.mxu0
      %1186 = vmatpush.msra.mxu0 0.0
      %1187 = vmatpush.msra.mxu0 0.0
      %1188 = vmatpush.msra.mxu0 0.0
      %1189 = vmatpush.msra.mxu0 0.0
      %1190 = vmatpush.msra.mxu0 0.0
      %1191 = vmatpush.msra.mxu0 0.0
      %1192 = vmatpush.msra.mxu0 0.0
      %1193 = vmatpush.msra.mxu0 %v1154
      %1194 = vmatpush.msra.mxu0 %v1143
      %1195 = vmatpush.msra.mxu0 %v1132
      %1196 = vmatpush.msra.mxu0 %v1121
      %1197 = vmatpush.msra.mxu0 %v1062
      %1198 = vmatpush.msra.mxu0 %v1110
      %1199 = vmatpush.msra.mxu0 %v1099
      %1200 = vmatpush.msra.mxu0 %v1088
      %1201 = vmatpush.msra.mxu0 %v1077
      %1202 = vmatmul.f32.gmra.mxu0 %v1164
      %v1203 = vpop.f32.mrf.mxu0
      %v1204 = vadd.f32 %v1160, %v1203
      %1205 = vdwg.mxu0
      %v1206 = vmax.f32 %v1184, 0.0
      %v1207 = vmax.f32 %v1204, 0.0
      %v1208 = vmin.f32 %v1206, 6.0
      %v1209 = vmin.f32 %v1207, 6.0
      %1210 = vst [vmem:[%s558] sm:$0xff] %v1208
      %1211 = vst [vmem:[%s558 + $0x8] sm:$0xff] %v1209
      %p1212 = scmp.lt.s32.totalorder %s27, 1
      %s1213 = scalar_select %p1212, %s27, 1
      %s1214 = smul.addr %s1213, 2
      %s1215 = smul.addr %s1214, 8
      %s1216 = scalar_lea.vmem %s16, %s1215
      // Predicated region
      $region85: #{asff_level2_forward.1} parent=83 // pred_check
        %p1217 = pneg %p396
      $region86: #{asff_level2_forward.1} parent=83 // pred_check_branch
        %1219 = sbr.rel (%p1217) target = $region88
      $region87: #{asff_level2_forward.1} parent=83 // pred_region
        _
      $region88: #{asff_level2_forward.1} parent=83 // pred_fallthru
        _
    $region84: #{asff_level2_forward.1} parent=5 // pred_fallthru
      _
    %p1220 = scmp.le.s32.totalorder 2, %s22
    // Predicated region
    $region89: #{asff_level2_forward.1} parent=5 // pred_check
      %p1221 = pneg %p1220
    $region90: #{asff_level2_forward.1} parent=5 // pred_check_branch
      %1223 = sbr.rel (%p1221) target = $region92
    $region91: #{asff_level2_forward.1} parent=5 // pred_region
      %s1224 = ssub.s32 %s22, 2
      // Predicated region
      $region93: #{asff_level2_forward.1} parent=91 // pred_check
        %p1225 = pneg %p402
      $region94: #{asff_level2_forward.1} parent=91 // pred_check_branch
        %1227 = sbr.rel (%p1225) target = $region96
      $region95: #{asff_level2_forward.1} parent=91 // pred_region
        %p1228 = scmp.lt.s32.totalorder %s28, 1
        %s1229 = scalar_select %p1228, %s28, 1
        %s1230 = smul.addr %s1229, 2
        %s1231 = smul.addr %s1230, 8
        %s1232 = scalar_lea.vmem %s16, %s1231
      $region96: #{asff_level2_forward.1} parent=91 // pred_fallthru
        _
    $region92: #{asff_level2_forward.1} parent=5 // pred_fallthru
      _
  $region6: #{asff_level2_forward.1} parent=0 // loop_footer
    %s26 = sadd.s32 1, %s22
  $region7: #{asff_level2_forward.1} parent=0 // loop_footer_branch
    %21 = sbr.rel target = $region3
  $region8: #{asff_level2_forward.1} parent=0 // loop_exit
    _

</llo_original>
